<compile_context>
chip_gen: v7x
topology: tpu7x:2x2x1
jax: 0.10.0
libtpu: 0.0.40
codegen_flags: <defaults>
</compile_context>

<pallas_src>
import math

import jax
import jax.numpy as jnp
from jax.experimental import pallas as pl
from jax.experimental.pallas import tpu as pltpu

N_PAD = 128  # FC output padded to a lane-dense width; sliced to 10 outside.


# ------------------------------ fused kernel ------------------------------

def fused_cnn_kernel(tap_ref, wq_ref, cb_ref, gamma_ref, beta_ref,
                     fcw_ref, fcb_ref, o_ref):
    """One-shot fused forward.

    tap_ref  : (36, B, 1, 49) f32  conv input windows; index t*4 + (dr*2+dc)
               with t = ki*3+kj; tap[t*4+corner, b, 0, ph*7+pw] ==
               x_pad[b, 4*ph + 2*dr + ki, 4*pw + 2*dc + kj]
    wq_ref   : (9, 8, 1)   f32  conv weights, wq[t, oc, 0] = w[oc, 0, ki, kj]
    cb_ref   : (8, 1)      f32  conv bias
    gamma_ref: (8, 1)      f32  BN gamma
    beta_ref : (8, 1)      f32  BN beta
    fcw_ref  : (8, 49, 128) f32  fc weight, fcw[c, s, n] = W[n, c*49+s] (n<10)
    fcb_ref  : (1, 128)    f32  fc bias (zero padded)
    o_ref    : (B, 128)    f32  output, first 10 lanes valid
    """
    f32 = jnp.float32
    B = o_ref.shape[0]
    inv_n = 1.0 / (B * 14 * 14)          # BN normalizer: N*H*W per channel
    eps = 1e-5

    # ---- conv (+bias): 9 broadcast multiply-accumulates, all channels at once
    acc = wq_ref[0] * tap_ref[0:4]                     # (8,1)*(4,B,1,49)->(4,B,8,49)
    for t in range(1, 9):
        acc = acc + wq_ref[t] * tap_ref[4 * t:4 * t + 4]
    acc = acc + cb_ref[...]                            # conv bias (broadcast)

    # ---- BatchNorm, training-mode batch statistics, two-pass ----
    def _per_channel_sum(v):                           # (4,B,8,49) -> (8,1)
        r = jnp.sum(v, axis=3, keepdims=True)          # lane reduce -> (4,B,8,1)
        total = r[0][0]
        for corner in range(4):
            for bb in range(B):
                if corner == 0 and bb == 0:
                    continue
                total = total + r[corner][bb]
        return total

    mean = _per_channel_sum(acc) * inv_n               # (8,1)
    acc = acc - mean                                   # centered conv output
    var = _per_channel_sum(acc * acc) * inv_n          # biased (unbiased=False)
    scale = gamma_ref[...] * jax.lax.rsqrt(var + eps)  # (8,1), rsqrt -> EUP
    act = jnp.maximum(acc * scale + beta_ref[...], 0.0)

    # ---- 2x2/2 max-pool == elementwise max over the 4 conv parity corners ----
    pooled = jnp.maximum(jnp.maximum(act[0], act[1]),
                         jnp.maximum(act[2], act[3]))  # (B, 8, 49)

    # ---- fully-connected on the MXU, lane-dense (B, 128) output store ----
    fcb = fcb_ref[...]                                 # (1, 128)
    samples = [pooled[b] for b in range(B)]            # each (8, 49)
    rows = [jnp.zeros((1, N_PAD), dtype=f32) for _ in range(B)]
    for c in range(8):
        w_c = fcw_ref[c]                               # (49, 128)
        for b in range(B):
            rows[b] = rows[b] + jnp.dot(samples[b][c][None, :], w_c,
                                        preferred_element_type=f32)
    for b in range(B):
        o_ref[b:b + 1, :] = rows[b] + fcb


# ------------------------------ wrappers ------------------------------

def prepare_params(conv_w, conv_b, gamma, beta, fc_w, fc_b):
    """Kernel-ready weight layouts.  Run ONCE at model setup (hoisted out of
    the per-call path per the perf review)."""
    f32 = jnp.float32
    wq = jnp.transpose(conv_w.astype(f32).reshape(8, 9), (1, 0)).reshape(9, 8, 1)
    cb = conv_b.astype(f32).reshape(8, 1)
    gam = gamma.astype(f32).reshape(8, 1)
    bet = beta.astype(f32).reshape(8, 1)
    fcw = fc_w.astype(f32).reshape(10, 8, 49).transpose(1, 2, 0)     # (8,49,10)
    fcw = jnp.pad(fcw, ((0, 0), (0, 0), (0, N_PAD - 10)))            # (8,49,128)
    fcb = jnp.pad(fc_b.astype(f32), (0, N_PAD - 10)).reshape(1, N_PAD)
    return wq, cb, gam, bet, fcw, fcb


@jax.jit
def my_cnn_forward(x, wq, cb, gam, bet, fcw, fcb):
    """x: (B, 1, 28, 28) f32 -> (B, 10) f32.  Matches MyCNN.forward (training)."""
    f32 = jnp.float32
    B = x.shape[0]

    # Per-call input glue: pad + gather of the 25 shifted stride-4 windows
    # (u = 2*dr + ki, v = 2*dc + kj), laid out lane-flat so the kernel never
    # slices inside a tile.  ~50 KB total, fused by XLA into one small gather.
    xp = jnp.pad(x[:, 0].astype(f32), ((0, 0), (1, 1), (1, 1)))      # (B,30,30)
    win = {}
    for u in range(5):
        for v in range(5):
            win[(u, v)] = xp[:, u:u + 25:4, v:v + 25:4]              # (B,7,7)
    tap_list = [win[(2 * dr + ki, 2 * dc + kj)]
                for ki in range(3) for kj in range(3)
                for dr in range(2) for dc in range(2)]
    taps = jnp.stack(tap_list, axis=0).reshape(36, B, 1, 49)

    vmem = pl.BlockSpec(memory_space=pltpu.MemorySpace.VMEM)
    # TODO(synk): running_mean / running_var buffer updates (training-time side
    # effect of nn.BatchNorm2d) are not materialized; they do not affect the
    # forward output.
    out = pl.pallas_call(
        fused_cnn_kernel,
        out_shape=jax.ShapeDtypeStruct((B, N_PAD), f32),
        in_specs=[vmem] * 7,
        out_specs=vmem,
    )(taps, wq, cb, gam, bet, fcw, fcb)
    return out[:, :10]


# ------------------------------ reference (for self-check) ------------------

def reference_forward(x, conv_w, conv_b, gamma, beta, fc_w, fc_b):
    """Pure-JAX reference of MyCNN.forward (training-mode BN)."""
    hi = jax.lax.Precision.HIGHEST
    B = x.shape[0]
    xp = jnp.pad(x, ((0, 0), (0, 0), (1, 1), (1, 1)))
    conv = jax.lax.conv_general_dilated(
        xp, conv_w, window_strides=(2, 2), padding="VALID",
        dimension_numbers=("NCHW", "OIHW", "NCHW"), precision=hi)
    conv = conv + conv_b[None, :, None, None]
    mean = jnp.mean(conv, axis=(0, 2, 3), keepdims=True)
    var = jnp.var(conv, axis=(0, 2, 3), keepdims=True)
    y = (conv - mean) / jnp.sqrt(var + 1e-5)
    y = gamma[None, :, None, None] * y + beta[None, :, None, None]
    y = jnp.maximum(y, 0.0)
    p = y.reshape(B, 8, 7, 2, 7, 2).max(axis=(3, 5))
    return jnp.dot(p.reshape(B, 8 * 7 * 7), fc_w.T, precision=hi) + fc_b


# ------------------------------ demo / smoke test ------------------------------

if __name__ == "__main__":
    key = jax.random.PRNGKey(0)
    k1, k2, k3, k4 = jax.random.split(key, 4)

    # deterministic parameter init (shapes from MyCNN.__init__)
    conv_w = jax.random.normal(k1, (8, 1, 3, 3), dtype=jnp.float32) * 0.01
    conv_b = jnp.zeros((8,), jnp.float32)
    gamma = jnp.ones((8,), jnp.float32)
    beta = jnp.zeros((8,), jnp.float32)
    fan_in = 8 * 7 * 7
    bound = 1.0 / math.sqrt(fan_in)
    fc_w = jax.random.uniform(k2, (10, fan_in), minval=-bound, maxval=bound,
                              dtype=jnp.float32)
    fc_b = jax.random.uniform(k3, (10,), minval=-bound, maxval=bound,
                              dtype=jnp.float32)

    # input: NCHW, 28x28 (implied by fc = Linear(8*7*7, 10))
    x = jax.random.normal(k4, (2, 1, 28, 28), dtype=jnp.float32)

    params = prepare_params(conv_w, conv_b, gamma, beta, fc_w, fc_b)
    out = my_cnn_forward(x, *params)
    out = jax.block_until_ready(out)
    assert out.shape == (2, 10) and out.dtype == jnp.float32

    ref = jax.block_until_ready(
        reference_forward(x, conv_w, conv_b, gamma, beta, fc_w, fc_b))
    assert bool(jnp.allclose(out, ref, rtol=5e-3, atol=5e-3)), (out, ref)

    print("KERNEL_OK")
</pallas_src>

<mosaic_0001>
module attributes {stable_mosaic.version = 11 : i64} {
  func.func @fused_cnn_kernel(%arg0: memref<36x2x1x49xf32, #tpu.memory_space<vmem>>, %arg1: memref<9x8x1xf32, #tpu.memory_space<vmem>>, %arg2: memref<8x1xf32, #tpu.memory_space<vmem>>, %arg3: memref<8x1xf32, #tpu.memory_space<vmem>>, %arg4: memref<8x1xf32, #tpu.memory_space<vmem>>, %arg5: memref<8x49x128xf32, #tpu.memory_space<vmem>>, %arg6: memref<1x128xf32, #tpu.memory_space<vmem>>, %arg7: memref<2x128xf32, #tpu.memory_space<vmem>>) attributes {dimension_semantics = [], scalar_prefetch = 0 : i64, scratch_operands = 0 : i64, tpu.core_type = #tpu.core_type<tc>} {
    %c0 = arith.constant 0 : index
    %c0_0 = arith.constant 0 : index
    %c0_1 = arith.constant 0 : index
    %0 = vector.load %arg1[%c0, %c0_0, %c0_1] : memref<9x8x1xf32, #tpu.memory_space<vmem>>, vector<1x8x1xf32>
    %1 = vector.shape_cast %0 : vector<1x8x1xf32> to vector<8x1xf32>
    %c0_2 = arith.constant 0 : index
    %c0_3 = arith.constant 0 : index
    %c0_4 = arith.constant 0 : index
    %c0_5 = arith.constant 0 : index
    %2 = vector.load %arg0[%c0_2, %c0_3, %c0_4, %c0_5] : memref<36x2x1x49xf32, #tpu.memory_space<vmem>>, vector<4x2x1x49xf32>
    %3 = vector.shape_cast %1 : vector<8x1xf32> to vector<1x1x8x1xf32>
    %4 = vector.broadcast %3 : vector<1x1x8x1xf32> to vector<4x2x8x49xf32>
    %5 = vector.broadcast %2 : vector<4x2x1x49xf32> to vector<4x2x8x49xf32>
    %6 = arith.mulf %4, %5 : vector<4x2x8x49xf32>
    %c1 = arith.constant 1 : index
    %c0_6 = arith.constant 0 : index
    %c0_7 = arith.constant 0 : index
    %7 = vector.load %arg1[%c1, %c0_6, %c0_7] : memref<9x8x1xf32, #tpu.memory_space<vmem>>, vector<1x8x1xf32>
    %8 = vector.shape_cast %7 : vector<1x8x1xf32> to vector<8x1xf32>
    %c4 = arith.constant 4 : index
    %c0_8 = arith.constant 0 : index
    %c0_9 = arith.constant 0 : index
    %c0_10 = arith.constant 0 : index
    %9 = vector.load %arg0[%c4, %c0_8, %c0_9, %c0_10] : memref<36x2x1x49xf32, #tpu.memory_space<vmem>>, vector<4x2x1x49xf32>
    %10 = vector.shape_cast %8 : vector<8x1xf32> to vector<1x1x8x1xf32>
    %11 = vector.broadcast %10 : vector<1x1x8x1xf32> to vector<4x2x8x49xf32>
    %12 = vector.broadcast %9 : vector<4x2x1x49xf32> to vector<4x2x8x49xf32>
    %13 = arith.mulf %11, %12 : vector<4x2x8x49xf32>
    %14 = arith.addf %6, %13 : vector<4x2x8x49xf32>
    %c2 = arith.constant 2 : index
    %c0_11 = arith.constant 0 : index
    %c0_12 = arith.constant 0 : index
    %15 = vector.load %arg1[%c2, %c0_11, %c0_12] : memref<9x8x1xf32, #tpu.memory_space<vmem>>, vector<1x8x1xf32>
    %16 = vector.shape_cast %15 : vector<1x8x1xf32> to vector<8x1xf32>
    %c8 = arith.constant 8 : index
    %c0_13 = arith.constant 0 : index
    %c0_14 = arith.constant 0 : index
    %c0_15 = arith.constant 0 : index
    %17 = vector.load %arg0[%c8, %c0_13, %c0_14, %c0_15] : memref<36x2x1x49xf32, #tpu.memory_space<vmem>>, vector<4x2x1x49xf32>
    %18 = vector.shape_cast %16 : vector<8x1xf32> to vector<1x1x8x1xf32>
    %19 = vector.broadcast %18 : vector<1x1x8x1xf32> to vector<4x2x8x49xf32>
    %20 = vector.broadcast %17 : vector<4x2x1x49xf32> to vector<4x2x8x49xf32>
    %21 = arith.mulf %19, %20 : vector<4x2x8x49xf32>
    %22 = arith.addf %14, %21 : vector<4x2x8x49xf32>
    %c3 = arith.constant 3 : index
    %c0_16 = arith.constant 0 : index
    %c0_17 = arith.constant 0 : index
    %23 = vector.load %arg1[%c3, %c0_16, %c0_17] : memref<9x8x1xf32, #tpu.memory_space<vmem>>, vector<1x8x1xf32>
    %24 = vector.shape_cast %23 : vector<1x8x1xf32> to vector<8x1xf32>
    %c12 = arith.constant 12 : index
    %c0_18 = arith.constant 0 : index
    %c0_19 = arith.constant 0 : index
    %c0_20 = arith.constant 0 : index
    %25 = vector.load %arg0[%c12, %c0_18, %c0_19, %c0_20] : memref<36x2x1x49xf32, #tpu.memory_space<vmem>>, vector<4x2x1x49xf32>
    %26 = vector.shape_cast %24 : vector<8x1xf32> to vector<1x1x8x1xf32>
    %27 = vector.broadcast %26 : vector<1x1x8x1xf32> to vector<4x2x8x49xf32>
    %28 = vector.broadcast %25 : vector<4x2x1x49xf32> to vector<4x2x8x49xf32>
    %29 = arith.mulf %27, %28 : vector<4x2x8x49xf32>
    %30 = arith.addf %22, %29 : vector<4x2x8x49xf32>
    %c4_21 = arith.constant 4 : index
    %c0_22 = arith.constant 0 : index
    %c0_23 = arith.constant 0 : index
    %31 = vector.load %arg1[%c4_21, %c0_22, %c0_23] : memref<9x8x1xf32, #tpu.memory_space<vmem>>, vector<1x8x1xf32>
    %32 = vector.shape_cast %31 : vector<1x8x1xf32> to vector<8x1xf32>
    %c16 = arith.constant 16 : index
    %c0_24 = arith.constant 0 : index
    %c0_25 = arith.constant 0 : index
    %c0_26 = arith.constant 0 : index
    %33 = vector.load %arg0[%c16, %c0_24, %c0_25, %c0_26] : memref<36x2x1x49xf32, #tpu.memory_space<vmem>>, vector<4x2x1x49xf32>
    %34 = vector.shape_cast %32 : vector<8x1xf32> to vector<1x1x8x1xf32>
    %35 = vector.broadcast %34 : vector<1x1x8x1xf32> to vector<4x2x8x49xf32>
    %36 = vector.broadcast %33 : vector<4x2x1x49xf32> to vector<4x2x8x49xf32>
    %37 = arith.mulf %35, %36 : vector<4x2x8x49xf32>
    %38 = arith.addf %30, %37 : vector<4x2x8x49xf32>
    %c5 = arith.constant 5 : index
    %c0_27 = arith.constant 0 : index
    %c0_28 = arith.constant 0 : index
    %39 = vector.load %arg1[%c5, %c0_27, %c0_28] : memref<9x8x1xf32, #tpu.memory_space<vmem>>, vector<1x8x1xf32>
    %40 = vector.shape_cast %39 : vector<1x8x1xf32> to vector<8x1xf32>
    %c20 = arith.constant 20 : index
    %c0_29 = arith.constant 0 : index
    %c0_30 = arith.constant 0 : index
    %c0_31 = arith.constant 0 : index
    %41 = vector.load %arg0[%c20, %c0_29, %c0_30, %c0_31] : memref<36x2x1x49xf32, #tpu.memory_space<vmem>>, vector<4x2x1x49xf32>
    %42 = vector.shape_cast %40 : vector<8x1xf32> to vector<1x1x8x1xf32>
    %43 = vector.broadcast %42 : vector<1x1x8x1xf32> to vector<4x2x8x49xf32>
    %44 = vector.broadcast %41 : vector<4x2x1x49xf32> to vector<4x2x8x49xf32>
    %45 = arith.mulf %43, %44 : vector<4x2x8x49xf32>
    %46 = arith.addf %38, %45 : vector<4x2x8x49xf32>
    %c6 = arith.constant 6 : index
    %c0_32 = arith.constant 0 : index
    %c0_33 = arith.constant 0 : index
    %47 = vector.load %arg1[%c6, %c0_32, %c0_33] : memref<9x8x1xf32, #tpu.memory_space<vmem>>, vector<1x8x1xf32>
    %48 = vector.shape_cast %47 : vector<1x8x1xf32> to vector<8x1xf32>
    %c24 = arith.constant 24 : index
    %c0_34 = arith.constant 0 : index
    %c0_35 = arith.constant 0 : index
    %c0_36 = arith.constant 0 : index
    %49 = vector.load %arg0[%c24, %c0_34, %c0_35, %c0_36] : memref<36x2x1x49xf32, #tpu.memory_space<vmem>>, vector<4x2x1x49xf32>
    %50 = vector.shape_cast %48 : vector<8x1xf32> to vector<1x1x8x1xf32>
    %51 = vector.broadcast %50 : vector<1x1x8x1xf32> to vector<4x2x8x49xf32>
    %52 = vector.broadcast %49 : vector<4x2x1x49xf32> to vector<4x2x8x49xf32>
    %53 = arith.mulf %51, %52 : vector<4x2x8x49xf32>
    %54 = arith.addf %46, %53 : vector<4x2x8x49xf32>
    %c7 = arith.constant 7 : index
    %c0_37 = arith.constant 0 : index
    %c0_38 = arith.constant 0 : index
    %55 = vector.load %arg1[%c7, %c0_37, %c0_38] : memref<9x8x1xf32, #tpu.memory_space<vmem>>, vector<1x8x1xf32>
    %56 = vector.shape_cast %55 : vector<1x8x1xf32> to vector<8x1xf32>
    %c28 = arith.constant 28 : index
    %c0_39 = arith.constant 0 : index
    %c0_40 = arith.constant 0 : index
    %c0_41 = arith.constant 0 : index
    %57 = vector.load %arg0[%c28, %c0_39, %c0_40, %c0_41] : memref<36x2x1x49xf32, #tpu.memory_space<vmem>>, vector<4x2x1x49xf32>
    %58 = vector.shape_cast %56 : vector<8x1xf32> to vector<1x1x8x1xf32>
    %59 = vector.broadcast %58 : vector<1x1x8x1xf32> to vector<4x2x8x49xf32>
    %60 = vector.broadcast %57 : vector<4x2x1x49xf32> to vector<4x2x8x49xf32>
    %61 = arith.mulf %59, %60 : vector<4x2x8x49xf32>
    %62 = arith.addf %54, %61 : vector<4x2x8x49xf32>
    %c8_42 = arith.constant 8 : index
    %c0_43 = arith.constant 0 : index
    %c0_44 = arith.constant 0 : index
    %63 = vector.load %arg1[%c8_42, %c0_43, %c0_44] : memref<9x8x1xf32, #tpu.memory_space<vmem>>, vector<1x8x1xf32>
    %64 = vector.shape_cast %63 : vector<1x8x1xf32> to vector<8x1xf32>
    %c32 = arith.constant 32 : index
    %c0_45 = arith.constant 0 : index
    %c0_46 = arith.constant 0 : index
    %c0_47 = arith.constant 0 : index
    %65 = vector.load %arg0[%c32, %c0_45, %c0_46, %c0_47] : memref<36x2x1x49xf32, #tpu.memory_space<vmem>>, vector<4x2x1x49xf32>
    %66 = vector.shape_cast %64 : vector<8x1xf32> to vector<1x1x8x1xf32>
    %67 = vector.broadcast %66 : vector<1x1x8x1xf32> to vector<4x2x8x49xf32>
    %68 = vector.broadcast %65 : vector<4x2x1x49xf32> to vector<4x2x8x49xf32>
    %69 = arith.mulf %67, %68 : vector<4x2x8x49xf32>
    %70 = arith.addf %62, %69 : vector<4x2x8x49xf32>
    %c0_48 = arith.constant 0 : index
    %c0_49 = arith.constant 0 : index
    %71 = vector.load %arg2[%c0_48, %c0_49] : memref<8x1xf32, #tpu.memory_space<vmem>>, vector<8x1xf32>
    %72 = vector.shape_cast %71 : vector<8x1xf32> to vector<1x1x8x1xf32>
    %73 = vector.broadcast %72 : vector<1x1x8x1xf32> to vector<4x2x8x49xf32>
    %74 = arith.addf %70, %73 : vector<4x2x8x49xf32>
    %cst = arith.constant dense<0.000000e+00> : vector<4x2x8xf32>
    %75 = vector.multi_reduction <add>, %74, %cst [3] : vector<4x2x8x49xf32> to vector<4x2x8xf32>
    %76 = vector.shape_cast %75 : vector<4x2x8xf32> to vector<4x2x8x1xf32>
    %77 = vector.extract_strided_slice %76 {offsets = [0, 0, 0, 0], sizes = [1, 2, 8, 1], strides = [1, 1, 1, 1]} : vector<4x2x8x1xf32> to vector<1x2x8x1xf32>
    %78 = vector.shape_cast %77 : vector<1x2x8x1xf32> to vector<2x8x1xf32>
    %79 = vector.extract_strided_slice %78 {offsets = [0, 0, 0], sizes = [1, 8, 1], strides = [1, 1, 1]} : vector<2x8x1xf32> to vector<1x8x1xf32>
    %80 = vector.shape_cast %79 : vector<1x8x1xf32> to vector<8x1xf32>
    %81 = vector.extract_strided_slice %76 {offsets = [0, 0, 0, 0], sizes = [1, 2, 8, 1], strides = [1, 1, 1, 1]} : vector<4x2x8x1xf32> to vector<1x2x8x1xf32>
    %82 = vector.shape_cast %81 : vector<1x2x8x1xf32> to vector<2x8x1xf32>
    %83 = vector.extract_strided_slice %82 {offsets = [1, 0, 0], sizes = [1, 8, 1], strides = [1, 1, 1]} : vector<2x8x1xf32> to vector<1x8x1xf32>
    %84 = vector.shape_cast %83 : vector<1x8x1xf32> to vector<8x1xf32>
    %85 = arith.addf %80, %84 : vector<8x1xf32>
    %86 = vector.extract_strided_slice %76 {offsets = [1, 0, 0, 0], sizes = [1, 2, 8, 1], strides = [1, 1, 1, 1]} : vector<4x2x8x1xf32> to vector<1x2x8x1xf32>
    %87 = vector.shape_cast %86 : vector<1x2x8x1xf32> to vector<2x8x1xf32>
    %88 = vector.extract_strided_slice %87 {offsets = [0, 0, 0], sizes = [1, 8, 1], strides = [1, 1, 1]} : vector<2x8x1xf32> to vector<1x8x1xf32>
    %89 = vector.shape_cast %88 : vector<1x8x1xf32> to vector<8x1xf32>
    %90 = arith.addf %85, %89 : vector<8x1xf32>
    %91 = vector.extract_strided_slice %76 {offsets = [1, 0, 0, 0], sizes = [1, 2, 8, 1], strides = [1, 1, 1, 1]} : vector<4x2x8x1xf32> to vector<1x2x8x1xf32>
    %92 = vector.shape_cast %91 : vector<1x2x8x1xf32> to vector<2x8x1xf32>
    %93 = vector.extract_strided_slice %92 {offsets = [1, 0, 0], sizes = [1, 8, 1], strides = [1, 1, 1]} : vector<2x8x1xf32> to vector<1x8x1xf32>
    %94 = vector.shape_cast %93 : vector<1x8x1xf32> to vector<8x1xf32>
    %95 = arith.addf %90, %94 : vector<8x1xf32>
    %96 = vector.extract_strided_slice %76 {offsets = [2, 0, 0, 0], sizes = [1, 2, 8, 1], strides = [1, 1, 1, 1]} : vector<4x2x8x1xf32> to vector<1x2x8x1xf32>
    %97 = vector.shape_cast %96 : vector<1x2x8x1xf32> to vector<2x8x1xf32>
    %98 = vector.extract_strided_slice %97 {offsets = [0, 0, 0], sizes = [1, 8, 1], strides = [1, 1, 1]} : vector<2x8x1xf32> to vector<1x8x1xf32>
    %99 = vector.shape_cast %98 : vector<1x8x1xf32> to vector<8x1xf32>
    %100 = arith.addf %95, %99 : vector<8x1xf32>
    %101 = vector.extract_strided_slice %76 {offsets = [2, 0, 0, 0], sizes = [1, 2, 8, 1], strides = [1, 1, 1, 1]} : vector<4x2x8x1xf32> to vector<1x2x8x1xf32>
    %102 = vector.shape_cast %101 : vector<1x2x8x1xf32> to vector<2x8x1xf32>
    %103 = vector.extract_strided_slice %102 {offsets = [1, 0, 0], sizes = [1, 8, 1], strides = [1, 1, 1]} : vector<2x8x1xf32> to vector<1x8x1xf32>
    %104 = vector.shape_cast %103 : vector<1x8x1xf32> to vector<8x1xf32>
    %105 = arith.addf %100, %104 : vector<8x1xf32>
    %106 = vector.extract_strided_slice %76 {offsets = [3, 0, 0, 0], sizes = [1, 2, 8, 1], strides = [1, 1, 1, 1]} : vector<4x2x8x1xf32> to vector<1x2x8x1xf32>
    %107 = vector.shape_cast %106 : vector<1x2x8x1xf32> to vector<2x8x1xf32>
    %108 = vector.extract_strided_slice %107 {offsets = [0, 0, 0], sizes = [1, 8, 1], strides = [1, 1, 1]} : vector<2x8x1xf32> to vector<1x8x1xf32>
    %109 = vector.shape_cast %108 : vector<1x8x1xf32> to vector<8x1xf32>
    %110 = arith.addf %105, %109 : vector<8x1xf32>
    %111 = vector.extract_strided_slice %76 {offsets = [3, 0, 0, 0], sizes = [1, 2, 8, 1], strides = [1, 1, 1, 1]} : vector<4x2x8x1xf32> to vector<1x2x8x1xf32>
    %112 = vector.shape_cast %111 : vector<1x2x8x1xf32> to vector<2x8x1xf32>
    %113 = vector.extract_strided_slice %112 {offsets = [1, 0, 0], sizes = [1, 8, 1], strides = [1, 1, 1]} : vector<2x8x1xf32> to vector<1x8x1xf32>
    %114 = vector.shape_cast %113 : vector<1x8x1xf32> to vector<8x1xf32>
    %115 = arith.addf %110, %114 : vector<8x1xf32>
    %cst_50 = arith.constant 0.00255102036 : f32
    %116 = vector.broadcast %cst_50 : f32 to vector<8x1xf32>
    %117 = arith.mulf %115, %116 : vector<8x1xf32>
    %118 = vector.shape_cast %117 : vector<8x1xf32> to vector<1x1x8x1xf32>
    %119 = vector.broadcast %118 : vector<1x1x8x1xf32> to vector<4x2x8x49xf32>
    %120 = arith.subf %74, %119 : vector<4x2x8x49xf32>
    %121 = arith.mulf %120, %120 : vector<4x2x8x49xf32>
    %cst_51 = arith.constant dense<0.000000e+00> : vector<4x2x8xf32>
    %122 = vector.multi_reduction <add>, %121, %cst_51 [3] : vector<4x2x8x49xf32> to vector<4x2x8xf32>
    %123 = vector.shape_cast %122 : vector<4x2x8xf32> to vector<4x2x8x1xf32>
    %124 = vector.extract_strided_slice %123 {offsets = [0, 0, 0, 0], sizes = [1, 2, 8, 1], strides = [1, 1, 1, 1]} : vector<4x2x8x1xf32> to vector<1x2x8x1xf32>
    %125 = vector.shape_cast %124 : vector<1x2x8x1xf32> to vector<2x8x1xf32>
    %126 = vector.extract_strided_slice %125 {offsets = [0, 0, 0], sizes = [1, 8, 1], strides = [1, 1, 1]} : vector<2x8x1xf32> to vector<1x8x1xf32>
    %127 = vector.shape_cast %126 : vector<1x8x1xf32> to vector<8x1xf32>
    %128 = vector.extract_strided_slice %123 {offsets = [0, 0, 0, 0], sizes = [1, 2, 8, 1], strides = [1, 1, 1, 1]} : vector<4x2x8x1xf32> to vector<1x2x8x1xf32>
    %129 = vector.shape_cast %128 : vector<1x2x8x1xf32> to vector<2x8x1xf32>
    %130 = vector.extract_strided_slice %129 {offsets = [1, 0, 0], sizes = [1, 8, 1], strides = [1, 1, 1]} : vector<2x8x1xf32> to vector<1x8x1xf32>
    %131 = vector.shape_cast %130 : vector<1x8x1xf32> to vector<8x1xf32>
    %132 = arith.addf %127, %131 : vector<8x1xf32>
    %133 = vector.extract_strided_slice %123 {offsets = [1, 0, 0, 0], sizes = [1, 2, 8, 1], strides = [1, 1, 1, 1]} : vector<4x2x8x1xf32> to vector<1x2x8x1xf32>
    %134 = vector.shape_cast %133 : vector<1x2x8x1xf32> to vector<2x8x1xf32>
    %135 = vector.extract_strided_slice %134 {offsets = [0, 0, 0], sizes = [1, 8, 1], strides = [1, 1, 1]} : vector<2x8x1xf32> to vector<1x8x1xf32>
    %136 = vector.shape_cast %135 : vector<1x8x1xf32> to vector<8x1xf32>
    %137 = arith.addf %132, %136 : vector<8x1xf32>
    %138 = vector.extract_strided_slice %123 {offsets = [1, 0, 0, 0], sizes = [1, 2, 8, 1], strides = [1, 1, 1, 1]} : vector<4x2x8x1xf32> to vector<1x2x8x1xf32>
    %139 = vector.shape_cast %138 : vector<1x2x8x1xf32> to vector<2x8x1xf32>
    %140 = vector.extract_strided_slice %139 {offsets = [1, 0, 0], sizes = [1, 8, 1], strides = [1, 1, 1]} : vector<2x8x1xf32> to vector<1x8x1xf32>
    %141 = vector.shape_cast %140 : vector<1x8x1xf32> to vector<8x1xf32>
    %142 = arith.addf %137, %141 : vector<8x1xf32>
    %143 = vector.extract_strided_slice %123 {offsets = [2, 0, 0, 0], sizes = [1, 2, 8, 1], strides = [1, 1, 1, 1]} : vector<4x2x8x1xf32> to vector<1x2x8x1xf32>
    %144 = vector.shape_cast %143 : vector<1x2x8x1xf32> to vector<2x8x1xf32>
    %145 = vector.extract_strided_slice %144 {offsets = [0, 0, 0], sizes = [1, 8, 1], strides = [1, 1, 1]} : vector<2x8x1xf32> to vector<1x8x1xf32>
    %146 = vector.shape_cast %145 : vector<1x8x1xf32> to vector<8x1xf32>
    %147 = arith.addf %142, %146 : vector<8x1xf32>
    %148 = vector.extract_strided_slice %123 {offsets = [2, 0, 0, 0], sizes = [1, 2, 8, 1], strides = [1, 1, 1, 1]} : vector<4x2x8x1xf32> to vector<1x2x8x1xf32>
    %149 = vector.shape_cast %148 : vector<1x2x8x1xf32> to vector<2x8x1xf32>
    %150 = vector.extract_strided_slice %149 {offsets = [1, 0, 0], sizes = [1, 8, 1], strides = [1, 1, 1]} : vector<2x8x1xf32> to vector<1x8x1xf32>
    %151 = vector.shape_cast %150 : vector<1x8x1xf32> to vector<8x1xf32>
    %152 = arith.addf %147, %151 : vector<8x1xf32>
    %153 = vector.extract_strided_slice %123 {offsets = [3, 0, 0, 0], sizes = [1, 2, 8, 1], strides = [1, 1, 1, 1]} : vector<4x2x8x1xf32> to vector<1x2x8x1xf32>
    %154 = vector.shape_cast %153 : vector<1x2x8x1xf32> to vector<2x8x1xf32>
    %155 = vector.extract_strided_slice %154 {offsets = [0, 0, 0], sizes = [1, 8, 1], strides = [1, 1, 1]} : vector<2x8x1xf32> to vector<1x8x1xf32>
    %156 = vector.shape_cast %155 : vector<1x8x1xf32> to vector<8x1xf32>
    %157 = arith.addf %152, %156 : vector<8x1xf32>
    %158 = vector.extract_strided_slice %123 {offsets = [3, 0, 0, 0], sizes = [1, 2, 8, 1], strides = [1, 1, 1, 1]} : vector<4x2x8x1xf32> to vector<1x2x8x1xf32>
    %159 = vector.shape_cast %158 : vector<1x2x8x1xf32> to vector<2x8x1xf32>
    %160 = vector.extract_strided_slice %159 {offsets = [1, 0, 0], sizes = [1, 8, 1], strides = [1, 1, 1]} : vector<2x8x1xf32> to vector<1x8x1xf32>
    %161 = vector.shape_cast %160 : vector<1x8x1xf32> to vector<8x1xf32>
    %162 = arith.addf %157, %161 : vector<8x1xf32>
    %cst_52 = arith.constant 0.00255102036 : f32
    %163 = vector.broadcast %cst_52 : f32 to vector<8x1xf32>
    %164 = arith.mulf %162, %163 : vector<8x1xf32>
    %c0_53 = arith.constant 0 : index
    %c0_54 = arith.constant 0 : index
    %165 = vector.load %arg3[%c0_53, %c0_54] : memref<8x1xf32, #tpu.memory_space<vmem>>, vector<8x1xf32>
    %cst_55 = arith.constant 9.99999974E-6 : f32
    %166 = vector.broadcast %cst_55 : f32 to vector<8x1xf32>
    %167 = arith.addf %164, %166 : vector<8x1xf32>
    %168 = math.rsqrt %167 : vector<8x1xf32>
    %169 = arith.mulf %165, %168 : vector<8x1xf32>
    %170 = vector.shape_cast %169 : vector<8x1xf32> to vector<1x1x8x1xf32>
    %171 = vector.broadcast %170 : vector<1x1x8x1xf32> to vector<4x2x8x49xf32>
    %172 = arith.mulf %120, %171 : vector<4x2x8x49xf32>
    %c0_56 = arith.constant 0 : index
    %c0_57 = arith.constant 0 : index
    %173 = vector.load %arg4[%c0_56, %c0_57] : memref<8x1xf32, #tpu.memory_space<vmem>>, vector<8x1xf32>
    %174 = vector.shape_cast %173 : vector<8x1xf32> to vector<1x1x8x1xf32>
    %175 = vector.broadcast %174 : vector<1x1x8x1xf32> to vector<4x2x8x49xf32>
    %176 = arith.addf %172, %175 : vector<4x2x8x49xf32>
    %cst_58 = arith.constant 0.000000e+00 : f32
    %177 = vector.broadcast %cst_58 : f32 to vector<4x2x8x49xf32>
    %178 = arith.maximumf %176, %177 : vector<4x2x8x49xf32>
    %179 = vector.extract_strided_slice %178 {offsets = [0, 0, 0, 0], sizes = [1, 2, 8, 49], strides = [1, 1, 1, 1]} : vector<4x2x8x49xf32> to vector<1x2x8x49xf32>
    %180 = vector.shape_cast %179 : vector<1x2x8x49xf32> to vector<2x8x49xf32>
    %181 = vector.extract_strided_slice %178 {offsets = [1, 0, 0, 0], sizes = [1, 2, 8, 49], strides = [1, 1, 1, 1]} : vector<4x2x8x49xf32> to vector<1x2x8x49xf32>
    %182 = vector.shape_cast %181 : vector<1x2x8x49xf32> to vector<2x8x49xf32>
    %183 = arith.maximumf %180, %182 : vector<2x8x49xf32>
    %184 = vector.extract_strided_slice %178 {offsets = [2, 0, 0, 0], sizes = [1, 2, 8, 49], strides = [1, 1, 1, 1]} : vector<4x2x8x49xf32> to vector<1x2x8x49xf32>
    %185 = vector.shape_cast %184 : vector<1x2x8x49xf32> to vector<2x8x49xf32>
    %186 = vector.extract_strided_slice %178 {offsets = [3, 0, 0, 0], sizes = [1, 2, 8, 49], strides = [1, 1, 1, 1]} : vector<4x2x8x49xf32> to vector<1x2x8x49xf32>
    %187 = vector.shape_cast %186 : vector<1x2x8x49xf32> to vector<2x8x49xf32>
    %188 = arith.maximumf %185, %187 : vector<2x8x49xf32>
    %189 = arith.maximumf %183, %188 : vector<2x8x49xf32>
    %c0_59 = arith.constant 0 : index
    %c0_60 = arith.constant 0 : index
    %190 = vector.load %arg6[%c0_59, %c0_60] : memref<1x128xf32, #tpu.memory_space<vmem>>, vector<1x128xf32>
    %191 = vector.extract_strided_slice %189 {offsets = [0, 0, 0], sizes = [1, 8, 49], strides = [1, 1, 1]} : vector<2x8x49xf32> to vector<1x8x49xf32>
    %192 = vector.shape_cast %191 : vector<1x8x49xf32> to vector<8x49xf32>
    %193 = vector.extract_strided_slice %189 {offsets = [1, 0, 0], sizes = [1, 8, 49], strides = [1, 1, 1]} : vector<2x8x49xf32> to vector<1x8x49xf32>
    %194 = vector.shape_cast %193 : vector<1x8x49xf32> to vector<8x49xf32>
    %cst_61 = arith.constant 0.000000e+00 : f32
    %195 = vector.broadcast %cst_61 : f32 to vector<1x128xf32>
    %cst_62 = arith.constant 0.000000e+00 : f32
    %196 = vector.broadcast %cst_62 : f32 to vector<1x128xf32>
    %c0_63 = arith.constant 0 : index
    %c0_64 = arith.constant 0 : index
    %c0_65 = arith.constant 0 : index
    %197 = vector.load %arg5[%c0_63, %c0_64, %c0_65] : memref<8x49x128xf32, #tpu.memory_space<vmem>>, vector<1x49x128xf32>
    %198 = vector.shape_cast %197 : vector<1x49x128xf32> to vector<49x128xf32>
    %199 = vector.extract_strided_slice %192 {offsets = [0, 0], sizes = [1, 49], strides = [1, 1]} : vector<8x49xf32> to vector<1x49xf32>
    %200 = vector.shape_cast %199 : vector<1x49xf32> to vector<49xf32>
    %201 = vector.shape_cast %200 : vector<49xf32> to vector<1x49xf32>
    %cst_66 = arith.constant dense<0.000000e+00> : vector<1x128xf32>
    %202 = tpu.matmul %201, %198, %cst_66 {dimension_numbers = #tpu.dot_dimension_numbers<[1], [0], [0], [1], [0, 0, 1, 1], [], []>} : vector<1x49xf32>, vector<49x128xf32>, vector<1x128xf32> -> vector<1x128xf32>
    %203 = arith.addf %195, %202 : vector<1x128xf32>
    %204 = vector.extract_strided_slice %194 {offsets = [0, 0], sizes = [1, 49], strides = [1, 1]} : vector<8x49xf32> to vector<1x49xf32>
    %205 = vector.shape_cast %204 : vector<1x49xf32> to vector<49xf32>
    %206 = vector.shape_cast %205 : vector<49xf32> to vector<1x49xf32>
    %cst_67 = arith.constant dense<0.000000e+00> : vector<1x128xf32>
    %207 = tpu.matmul %206, %198, %cst_67 {dimension_numbers = #tpu.dot_dimension_numbers<[1], [0], [0], [1], [0, 0, 1, 1], [], []>} : vector<1x49xf32>, vector<49x128xf32>, vector<1x128xf32> -> vector<1x128xf32>
    %208 = arith.addf %196, %207 : vector<1x128xf32>
    %c1_68 = arith.constant 1 : index
    %c0_69 = arith.constant 0 : index
    %c0_70 = arith.constant 0 : index
    %209 = vector.load %arg5[%c1_68, %c0_69, %c0_70] : memref<8x49x128xf32, #tpu.memory_space<vmem>>, vector<1x49x128xf32>
    %210 = vector.shape_cast %209 : vector<1x49x128xf32> to vector<49x128xf32>
    %211 = vector.extract_strided_slice %192 {offsets = [1, 0], sizes = [1, 49], strides = [1, 1]} : vector<8x49xf32> to vector<1x49xf32>
    %212 = vector.shape_cast %211 : vector<1x49xf32> to vector<49xf32>
    %213 = vector.shape_cast %212 : vector<49xf32> to vector<1x49xf32>
    %cst_71 = arith.constant dense<0.000000e+00> : vector<1x128xf32>
    %214 = tpu.matmul %213, %210, %cst_71 {dimension_numbers = #tpu.dot_dimension_numbers<[1], [0], [0], [1], [0, 0, 1, 1], [], []>} : vector<1x49xf32>, vector<49x128xf32>, vector<1x128xf32> -> vector<1x128xf32>
    %215 = arith.addf %203, %214 : vector<1x128xf32>
    %216 = vector.extract_strided_slice %194 {offsets = [1, 0], sizes = [1, 49], strides = [1, 1]} : vector<8x49xf32> to vector<1x49xf32>
    %217 = vector.shape_cast %216 : vector<1x49xf32> to vector<49xf32>
    %218 = vector.shape_cast %217 : vector<49xf32> to vector<1x49xf32>
    %cst_72 = arith.constant dense<0.000000e+00> : vector<1x128xf32>
    %219 = tpu.matmul %218, %210, %cst_72 {dimension_numbers = #tpu.dot_dimension_numbers<[1], [0], [0], [1], [0, 0, 1, 1], [], []>} : vector<1x49xf32>, vector<49x128xf32>, vector<1x128xf32> -> vector<1x128xf32>
    %220 = arith.addf %208, %219 : vector<1x128xf32>
    %c2_73 = arith.constant 2 : index
    %c0_74 = arith.constant 0 : index
    %c0_75 = arith.constant 0 : index
    %221 = vector.load %arg5[%c2_73, %c0_74, %c0_75] : memref<8x49x128xf32, #tpu.memory_space<vmem>>, vector<1x49x128xf32>
    %222 = vector.shape_cast %221 : vector<1x49x128xf32> to vector<49x128xf32>
    %223 = vector.extract_strided_slice %192 {offsets = [2, 0], sizes = [1, 49], strides = [1, 1]} : vector<8x49xf32> to vector<1x49xf32>
    %224 = vector.shape_cast %223 : vector<1x49xf32> to vector<49xf32>
    %225 = vector.shape_cast %224 : vector<49xf32> to vector<1x49xf32>
    %cst_76 = arith.constant dense<0.000000e+00> : vector<1x128xf32>
    %226 = tpu.matmul %225, %222, %cst_76 {dimension_numbers = #tpu.dot_dimension_numbers<[1], [0], [0], [1], [0, 0, 1, 1], [], []>} : vector<1x49xf32>, vector<49x128xf32>, vector<1x128xf32> -> vector<1x128xf32>
    %227 = arith.addf %215, %226 : vector<1x128xf32>
    %228 = vector.extract_strided_slice %194 {offsets = [2, 0], sizes = [1, 49], strides = [1, 1]} : vector<8x49xf32> to vector<1x49xf32>
    %229 = vector.shape_cast %228 : vector<1x49xf32> to vector<49xf32>
    %230 = vector.shape_cast %229 : vector<49xf32> to vector<1x49xf32>
    %cst_77 = arith.constant dense<0.000000e+00> : vector<1x128xf32>
    %231 = tpu.matmul %230, %222, %cst_77 {dimension_numbers = #tpu.dot_dimension_numbers<[1], [0], [0], [1], [0, 0, 1, 1], [], []>} : vector<1x49xf32>, vector<49x128xf32>, vector<1x128xf32> -> vector<1x128xf32>
    %232 = arith.addf %220, %231 : vector<1x128xf32>
    %c3_78 = arith.constant 3 : index
    %c0_79 = arith.constant 0 : index
    %c0_80 = arith.constant 0 : index
    %233 = vector.load %arg5[%c3_78, %c0_79, %c0_80] : memref<8x49x128xf32, #tpu.memory_space<vmem>>, vector<1x49x128xf32>
    %234 = vector.shape_cast %233 : vector<1x49x128xf32> to vector<49x128xf32>
    %235 = vector.extract_strided_slice %192 {offsets = [3, 0], sizes = [1, 49], strides = [1, 1]} : vector<8x49xf32> to vector<1x49xf32>
    %236 = vector.shape_cast %235 : vector<1x49xf32> to vector<49xf32>
    %237 = vector.shape_cast %236 : vector<49xf32> to vector<1x49xf32>
    %cst_81 = arith.constant dense<0.000000e+00> : vector<1x128xf32>
    %238 = tpu.matmul %237, %234, %cst_81 {dimension_numbers = #tpu.dot_dimension_numbers<[1], [0], [0], [1], [0, 0, 1, 1], [], []>} : vector<1x49xf32>, vector<49x128xf32>, vector<1x128xf32> -> vector<1x128xf32>
    %239 = arith.addf %227, %238 : vector<1x128xf32>
    %240 = vector.extract_strided_slice %194 {offsets = [3, 0], sizes = [1, 49], strides = [1, 1]} : vector<8x49xf32> to vector<1x49xf32>
    %241 = vector.shape_cast %240 : vector<1x49xf32> to vector<49xf32>
    %242 = vector.shape_cast %241 : vector<49xf32> to vector<1x49xf32>
    %cst_82 = arith.constant dense<0.000000e+00> : vector<1x128xf32>
    %243 = tpu.matmul %242, %234, %cst_82 {dimension_numbers = #tpu.dot_dimension_numbers<[1], [0], [0], [1], [0, 0, 1, 1], [], []>} : vector<1x49xf32>, vector<49x128xf32>, vector<1x128xf32> -> vector<1x128xf32>
    %244 = arith.addf %232, %243 : vector<1x128xf32>
    %c4_83 = arith.constant 4 : index
    %c0_84 = arith.constant 0 : index
    %c0_85 = arith.constant 0 : index
    %245 = vector.load %arg5[%c4_83, %c0_84, %c0_85] : memref<8x49x128xf32, #tpu.memory_space<vmem>>, vector<1x49x128xf32>
    %246 = vector.shape_cast %245 : vector<1x49x128xf32> to vector<49x128xf32>
    %247 = vector.extract_strided_slice %192 {offsets = [4, 0], sizes = [1, 49], strides = [1, 1]} : vector<8x49xf32> to vector<1x49xf32>
    %248 = vector.shape_cast %247 : vector<1x49xf32> to vector<49xf32>
    %249 = vector.shape_cast %248 : vector<49xf32> to vector<1x49xf32>
    %cst_86 = arith.constant dense<0.000000e+00> : vector<1x128xf32>
    %250 = tpu.matmul %249, %246, %cst_86 {dimension_numbers = #tpu.dot_dimension_numbers<[1], [0], [0], [1], [0, 0, 1, 1], [], []>} : vector<1x49xf32>, vector<49x128xf32>, vector<1x128xf32> -> vector<1x128xf32>
    %251 = arith.addf %239, %250 : vector<1x128xf32>
    %252 = vector.extract_strided_slice %194 {offsets = [4, 0], sizes = [1, 49], strides = [1, 1]} : vector<8x49xf32> to vector<1x49xf32>
    %253 = vector.shape_cast %252 : vector<1x49xf32> to vector<49xf32>
    %254 = vector.shape_cast %253 : vector<49xf32> to vector<1x49xf32>
    %cst_87 = arith.constant dense<0.000000e+00> : vector<1x128xf32>
    %255 = tpu.matmul %254, %246, %cst_87 {dimension_numbers = #tpu.dot_dimension_numbers<[1], [0], [0], [1], [0, 0, 1, 1], [], []>} : vector<1x49xf32>, vector<49x128xf32>, vector<1x128xf32> -> vector<1x128xf32>
    %256 = arith.addf %244, %255 : vector<1x128xf32>
    %c5_88 = arith.constant 5 : index
    %c0_89 = arith.constant 0 : index
    %c0_90 = arith.constant 0 : index
    %257 = vector.load %arg5[%c5_88, %c0_89, %c0_90] : memref<8x49x128xf32, #tpu.memory_space<vmem>>, vector<1x49x128xf32>
    %258 = vector.shape_cast %257 : vector<1x49x128xf32> to vector<49x128xf32>
    %259 = vector.extract_strided_slice %192 {offsets = [5, 0], sizes = [1, 49], strides = [1, 1]} : vector<8x49xf32> to vector<1x49xf32>
    %260 = vector.shape_cast %259 : vector<1x49xf32> to vector<49xf32>
    %261 = vector.shape_cast %260 : vector<49xf32> to vector<1x49xf32>
    %cst_91 = arith.constant dense<0.000000e+00> : vector<1x128xf32>
    %262 = tpu.matmul %261, %258, %cst_91 {dimension_numbers = #tpu.dot_dimension_numbers<[1], [0], [0], [1], [0, 0, 1, 1], [], []>} : vector<1x49xf32>, vector<49x128xf32>, vector<1x128xf32> -> vector<1x128xf32>
    %263 = arith.addf %251, %262 : vector<1x128xf32>
    %264 = vector.extract_strided_slice %194 {offsets = [5, 0], sizes = [1, 49], strides = [1, 1]} : vector<8x49xf32> to vector<1x49xf32>
    %265 = vector.shape_cast %264 : vector<1x49xf32> to vector<49xf32>
    %266 = vector.shape_cast %265 : vector<49xf32> to vector<1x49xf32>
    %cst_92 = arith.constant dense<0.000000e+00> : vector<1x128xf32>
    %267 = tpu.matmul %266, %258, %cst_92 {dimension_numbers = #tpu.dot_dimension_numbers<[1], [0], [0], [1], [0, 0, 1, 1], [], []>} : vector<1x49xf32>, vector<49x128xf32>, vector<1x128xf32> -> vector<1x128xf32>
    %268 = arith.addf %256, %267 : vector<1x128xf32>
    %c6_93 = arith.constant 6 : index
    %c0_94 = arith.constant 0 : index
    %c0_95 = arith.constant 0 : index
    %269 = vector.load %arg5[%c6_93, %c0_94, %c0_95] : memref<8x49x128xf32, #tpu.memory_space<vmem>>, vector<1x49x128xf32>
    %270 = vector.shape_cast %269 : vector<1x49x128xf32> to vector<49x128xf32>
    %271 = vector.extract_strided_slice %192 {offsets = [6, 0], sizes = [1, 49], strides = [1, 1]} : vector<8x49xf32> to vector<1x49xf32>
    %272 = vector.shape_cast %271 : vector<1x49xf32> to vector<49xf32>
    %273 = vector.shape_cast %272 : vector<49xf32> to vector<1x49xf32>
    %cst_96 = arith.constant dense<0.000000e+00> : vector<1x128xf32>
    %274 = tpu.matmul %273, %270, %cst_96 {dimension_numbers = #tpu.dot_dimension_numbers<[1], [0], [0], [1], [0, 0, 1, 1], [], []>} : vector<1x49xf32>, vector<49x128xf32>, vector<1x128xf32> -> vector<1x128xf32>
    %275 = arith.addf %263, %274 : vector<1x128xf32>
    %276 = vector.extract_strided_slice %194 {offsets = [6, 0], sizes = [1, 49], strides = [1, 1]} : vector<8x49xf32> to vector<1x49xf32>
    %277 = vector.shape_cast %276 : vector<1x49xf32> to vector<49xf32>
    %278 = vector.shape_cast %277 : vector<49xf32> to vector<1x49xf32>
    %cst_97 = arith.constant dense<0.000000e+00> : vector<1x128xf32>
    %279 = tpu.matmul %278, %270, %cst_97 {dimension_numbers = #tpu.dot_dimension_numbers<[1], [0], [0], [1], [0, 0, 1, 1], [], []>} : vector<1x49xf32>, vector<49x128xf32>, vector<1x128xf32> -> vector<1x128xf32>
    %280 = arith.addf %268, %279 : vector<1x128xf32>
    %c7_98 = arith.constant 7 : index
    %c0_99 = arith.constant 0 : index
    %c0_100 = arith.constant 0 : index
    %281 = vector.load %arg5[%c7_98, %c0_99, %c0_100] : memref<8x49x128xf32, #tpu.memory_space<vmem>>, vector<1x49x128xf32>
    %282 = vector.shape_cast %281 : vector<1x49x128xf32> to vector<49x128xf32>
    %283 = vector.extract_strided_slice %192 {offsets = [7, 0], sizes = [1, 49], strides = [1, 1]} : vector<8x49xf32> to vector<1x49xf32>
    %284 = vector.shape_cast %283 : vector<1x49xf32> to vector<49xf32>
    %285 = vector.shape_cast %284 : vector<49xf32> to vector<1x49xf32>
    %cst_101 = arith.constant dense<0.000000e+00> : vector<1x128xf32>
    %286 = tpu.matmul %285, %282, %cst_101 {dimension_numbers = #tpu.dot_dimension_numbers<[1], [0], [0], [1], [0, 0, 1, 1], [], []>} : vector<1x49xf32>, vector<49x128xf32>, vector<1x128xf32> -> vector<1x128xf32>
    %287 = arith.addf %275, %286 : vector<1x128xf32>
    %288 = vector.extract_strided_slice %194 {offsets = [7, 0], sizes = [1, 49], strides = [1, 1]} : vector<8x49xf32> to vector<1x49xf32>
    %289 = vector.shape_cast %288 : vector<1x49xf32> to vector<49xf32>
    %290 = vector.shape_cast %289 : vector<49xf32> to vector<1x49xf32>
    %cst_102 = arith.constant dense<0.000000e+00> : vector<1x128xf32>
    %291 = tpu.matmul %290, %282, %cst_102 {dimension_numbers = #tpu.dot_dimension_numbers<[1], [0], [0], [1], [0, 0, 1, 1], [], []>} : vector<1x49xf32>, vector<49x128xf32>, vector<1x128xf32> -> vector<1x128xf32>
    %292 = arith.addf %280, %291 : vector<1x128xf32>
    %293 = arith.addf %287, %190 : vector<1x128xf32>
    %c0_103 = arith.constant 0 : index
    %c0_104 = arith.constant 0 : index
    %294 = vector.load %arg7[%c0_103, %c0_104] : memref<2x128xf32, #tpu.memory_space<vmem>>, vector<1x128xf32>
    tpu.vector_store %arg7[%c0_103, %c0_104], %293 {strides = array<i32>} : memref<2x128xf32, #tpu.memory_space<vmem>>, vector<1x128xf32>,
    %295 = arith.addf %292, %190 : vector<1x128xf32>
    %c1_105 = arith.constant 1 : index
    %c0_106 = arith.constant 0 : index
    %296 = vector.load %arg7[%c1_105, %c0_106] : memref<2x128xf32, #tpu.memory_space<vmem>>, vector<1x128xf32>
    tpu.vector_store %arg7[%c1_105, %c0_106], %295 {strides = array<i32>} : memref<2x128xf32, #tpu.memory_space<vmem>>, vector<1x128xf32>,
    return
  }
}

</mosaic_0001>

<llo_original>
// kernel: my_cnn_forward.1
$region0: #{my_cnn_forward.1}
  #allocation0 [shape = 'u32[]', space=smem, size = 0x4, offset = 0x4, fixed_abs, tag = 'smem constant byte address 0x4 - core index']
  #allocation1 [shape = 'u32[144,128]{1,0:T(1,128)}', space=vmem, size = 0x12000, scoped, tag = 'internal scratch']
  %s0 = inlined_call_operand.vmem [shape: f32[36,2,1,49], index: 0, kind: input, shape index: {}]
  %s1 = inlined_call_operand.vmem [shape: f32[9,8,1], index: 1, kind: input, shape index: {}]
  %s2 = inlined_call_operand.vmem [shape: f32[8,1], index: 2, kind: input, shape index: {}]
  %s3 = inlined_call_operand.vmem [shape: f32[8,1], index: 3, kind: input, shape index: {}]
  %s4 = inlined_call_operand.vmem [shape: f32[8,1], index: 4, kind: input, shape index: {}]
  %s5 = inlined_call_operand.vmem [shape: f32[8,49,128], index: 5, kind: input, shape index: {}]
  %s6 = inlined_call_operand.vmem [shape: f32[1,128], index: 6, kind: input, shape index: {}]
  %s7 = inlined_call_operand.hbm [shape: f32[2,128], index: 7, kind: output, shape index: {}]
  %s8 = sld [smem:[#allocation0]]
  $region38: #{my_cnn_forward.1} parent=0
    _
  %s10 = ssub.s32 1, %s8
  %s11 = scalar_select 0, %s10, %s8
  $region1: #{my_cnn_forward.1} parent=0
    #allocation2 [shape = 'u8[1024]{0}', space=vmem, size = 0x400, scoped, tag = 'output window, operand 0, single buffered']
    #allocation3 [shape = 's32[1]{0}', space=sflag, size = 0x4, scoped, tag = 'scoped memory for my_cnn_forward.1']
    %12 = vsyncpa [#allocation3], 0
    // Predicated region
    $region2: #{my_cnn_forward.1} parent=1 // pred_check
      _
    $region3: #{my_cnn_forward.1} parent=1 // pred_check_branch
      %14 = sbr.rel (0) target = $region5
    $region4: #{my_cnn_forward.1} parent=1 // pred_region
      _
    $region5: #{my_cnn_forward.1} parent=1 // pred_fallthru
      _
    // Predicated region
    $region6: #{my_cnn_forward.1} parent=1 // pred_check
      _
    $region7: #{my_cnn_forward.1} parent=1 // pred_check_branch
      %16 = sbr.rel (0) target = $region9
    $region8: #{my_cnn_forward.1} parent=1 // pred_region
      _
    $region9: #{my_cnn_forward.1} parent=1 // pred_fallthru
      _
    // Predicated region
    $region10: #{my_cnn_forward.1} parent=1 // pred_check
      _
    $region11: #{my_cnn_forward.1} parent=1 // pred_check_branch
      %18 = sbr.rel (0) target = $region13
    $region12: #{my_cnn_forward.1} parent=1 // pred_region
      _
    $region13: #{my_cnn_forward.1} parent=1 // pred_fallthru
      _
    // Predicated region
    $region14: #{my_cnn_forward.1} parent=1 // pred_check
      _
    $region15: #{my_cnn_forward.1} parent=1 // pred_check_branch
      %20 = sbr.rel (0) target = $region17
    $region16: #{my_cnn_forward.1} parent=1 // pred_region
      _
    $region17: #{my_cnn_forward.1} parent=1 // pred_fallthru
      _
    // Predicated region
    $region18: #{my_cnn_forward.1} parent=1 // pred_check
      _
    $region19: #{my_cnn_forward.1} parent=1 // pred_check_branch
      %22 = sbr.rel (0) target = $region21
    $region20: #{my_cnn_forward.1} parent=1 // pred_region
      _
    $region21: #{my_cnn_forward.1} parent=1 // pred_fallthru
      _
    // Predicated region
    $region22: #{my_cnn_forward.1} parent=1 // pred_check
      _
    $region23: #{my_cnn_forward.1} parent=1 // pred_check_branch
      %24 = sbr.rel (0) target = $region25
    $region24: #{my_cnn_forward.1} parent=1 // pred_region
      _
    $region25: #{my_cnn_forward.1} parent=1 // pred_fallthru
      _
    // Predicated region
    $region26: #{my_cnn_forward.1} parent=1 // pred_check
      _
    $region27: #{my_cnn_forward.1} parent=1 // pred_check_branch
      %26 = sbr.rel (0) target = $region29
    $region28: #{my_cnn_forward.1} parent=1 // pred_region
      _
    $region29: #{my_cnn_forward.1} parent=1 // pred_fallthru
      _
    %v27 = vld [vmem:[%s1] sm:$0xff]
    %v28 = vld [vmem:[%s0] sm:$0x1]
    %v29 = vld [vmem:[%s0 + $0x1] sm:$0x1]
    %v30 = vld [vmem:[%s0 + $0x2] sm:$0x1]
    %v31 = vld [vmem:[%s0 + $0x3] sm:$0x1]
    %v32 = vld [vmem:[%s0 + $0x4] sm:$0x1]
    %v33 = vld [vmem:[%s0 + $0x5] sm:$0x1]
    %v34 = vld [vmem:[%s0 + $0x6] sm:$0x1]
    %v35 = vld [vmem:[%s0 + $0x7] sm:$0x1]
    %37 = vset.pattern.permute.xlu0 0
    %38 = vperm.xlu0 %37, %v27
    %v39 = vpop.permute.xlu0 %38
    %v49 = vlaneseq
    %v50 = vshrl.u32 %v49, 7
    %v51 = vsub.s32 0, %v50
    %v52 = vrot.slane %v28, %v51
    %v53 = vlaneseq
    %v54 = vshrl.u32 %v53, 7
    %v55 = vsub.s32 0, %v54
    %v56 = vrot.slane %v29, %v55
    %v57 = vlaneseq
    %v58 = vshrl.u32 %v57, 7
    %v59 = vsub.s32 0, %v58
    %v60 = vrot.slane %v30, %v59
    %v61 = vlaneseq
    %v62 = vshrl.u32 %v61, 7
    %v63 = vsub.s32 0, %v62
    %v64 = vrot.slane %v31, %v63
    %v65 = vlaneseq
    %v66 = vshrl.u32 %v65, 7
    %v67 = vsub.s32 0, %v66
    %v68 = vrot.slane %v32, %v67
    %v69 = vlaneseq
    %v70 = vshrl.u32 %v69, 7
    %v71 = vsub.s32 0, %v70
    %v72 = vrot.slane %v33, %v71
    %v73 = vlaneseq
    %v74 = vshrl.u32 %v73, 7
    %v75 = vsub.s32 0, %v74
    %v76 = vrot.slane %v34, %v75
    %v77 = vlaneseq
    %v78 = vshrl.u32 %v77, 7
    %v79 = vsub.s32 0, %v78
    %v80 = vrot.slane %v35, %v79
    %v89 = vmul.f32 %v39, %v52
    %v90 = vmul.f32 %v39, %v56
    %v91 = vmul.f32 %v39, %v60
    %v92 = vmul.f32 %v39, %v64
    %v93 = vmul.f32 %v39, %v68
    %v94 = vmul.f32 %v39, %v72
    %v95 = vmul.f32 %v39, %v76
    %v96 = vmul.f32 %v39, %v80
    %s97 = scalar_lea.vmem %s1, 8
    %v98 = vld [vmem:[%s97] sm:$0xff]
    %s99 = scalar_lea.vmem %s0, 8
    %v100 = vld [vmem:[%s99] sm:$0x1]
    %v101 = vld [vmem:[%s99 + $0x1] sm:$0x1]
    %v102 = vld [vmem:[%s99 + $0x2] sm:$0x1]
    %v103 = vld [vmem:[%s99 + $0x3] sm:$0x1]
    %v104 = vld [vmem:[%s99 + $0x4] sm:$0x1]
    %v105 = vld [vmem:[%s99 + $0x5] sm:$0x1]
    %v106 = vld [vmem:[%s99 + $0x6] sm:$0x1]
    %v107 = vld [vmem:[%s99 + $0x7] sm:$0x1]
    %109 = vset.pattern.permute.xlu0 0
    %110 = vperm.xlu0 %109, %v98
    %v111 = vpop.permute.xlu0 %110
    %v121 = vlaneseq
    %v122 = vshrl.u32 %v121, 7
    %v123 = vsub.s32 0, %v122
    %v124 = vrot.slane %v100, %v123
    %v125 = vlaneseq
    %v126 = vshrl.u32 %v125, 7
    %v127 = vsub.s32 0, %v126
    %v128 = vrot.slane %v101, %v127
    %v129 = vlaneseq
    %v130 = vshrl.u32 %v129, 7
    %v131 = vsub.s32 0, %v130
    %v132 = vrot.slane %v102, %v131
    %v133 = vlaneseq
    %v134 = vshrl.u32 %v133, 7
    %v135 = vsub.s32 0, %v134
    %v136 = vrot.slane %v103, %v135
    %v137 = vlaneseq
    %v138 = vshrl.u32 %v137, 7
    %v139 = vsub.s32 0, %v138
    %v140 = vrot.slane %v104, %v139
    %v141 = vlaneseq
    %v142 = vshrl.u32 %v141, 7
    %v143 = vsub.s32 0, %v142
    %v144 = vrot.slane %v105, %v143
    %v145 = vlaneseq
    %v146 = vshrl.u32 %v145, 7
    %v147 = vsub.s32 0, %v146
    %v148 = vrot.slane %v106, %v147
    %v149 = vlaneseq
    %v150 = vshrl.u32 %v149, 7
    %v151 = vsub.s32 0, %v150
    %v152 = vrot.slane %v107, %v151
    %v161 = vmul.f32 %v111, %v124
    %v162 = vmul.f32 %v111, %v128
    %v163 = vmul.f32 %v111, %v132
    %v164 = vmul.f32 %v111, %v136
    %v165 = vmul.f32 %v111, %v140
    %v166 = vmul.f32 %v111, %v144
    %v167 = vmul.f32 %v111, %v148
    %v168 = vmul.f32 %v111, %v152
    %v169 = vadd.f32 %v89, %v161
    %v170 = vadd.f32 %v90, %v162
    %v171 = vadd.f32 %v91, %v163
    %v172 = vadd.f32 %v92, %v164
    %v173 = vadd.f32 %v93, %v165
    %v174 = vadd.f32 %v94, %v166
    %v175 = vadd.f32 %v95, %v167
    %v176 = vadd.f32 %v96, %v168
    %s177 = scalar_lea.vmem %s1, 16
    %v178 = vld [vmem:[%s177] sm:$0xff]
    %s179 = scalar_lea.vmem %s0, 16
    %v180 = vld [vmem:[%s179] sm:$0x1]
    %v181 = vld [vmem:[%s179 + $0x1] sm:$0x1]
    %v182 = vld [vmem:[%s179 + $0x2] sm:$0x1]
    %v183 = vld [vmem:[%s179 + $0x3] sm:$0x1]
    %v184 = vld [vmem:[%s179 + $0x4] sm:$0x1]
    %v185 = vld [vmem:[%s179 + $0x5] sm:$0x1]
    %v186 = vld [vmem:[%s179 + $0x6] sm:$0x1]
    %v187 = vld [vmem:[%s179 + $0x7] sm:$0x1]
    %189 = vset.pattern.permute.xlu0 0
    %190 = vperm.xlu0 %189, %v178
    %v191 = vpop.permute.xlu0 %190
    %v201 = vlaneseq
    %v202 = vshrl.u32 %v201, 7
    %v203 = vsub.s32 0, %v202
    %v204 = vrot.slane %v180, %v203
    %v205 = vlaneseq
    %v206 = vshrl.u32 %v205, 7
    %v207 = vsub.s32 0, %v206
    %v208 = vrot.slane %v181, %v207
    %v209 = vlaneseq
    %v210 = vshrl.u32 %v209, 7
    %v211 = vsub.s32 0, %v210
    %v212 = vrot.slane %v182, %v211
    %v213 = vlaneseq
    %v214 = vshrl.u32 %v213, 7
    %v215 = vsub.s32 0, %v214
    %v216 = vrot.slane %v183, %v215
    %v217 = vlaneseq
    %v218 = vshrl.u32 %v217, 7
    %v219 = vsub.s32 0, %v218
    %v220 = vrot.slane %v184, %v219
    %v221 = vlaneseq
    %v222 = vshrl.u32 %v221, 7
    %v223 = vsub.s32 0, %v222
    %v224 = vrot.slane %v185, %v223
    %v225 = vlaneseq
    %v226 = vshrl.u32 %v225, 7
    %v227 = vsub.s32 0, %v226
    %v228 = vrot.slane %v186, %v227
    %v229 = vlaneseq
    %v230 = vshrl.u32 %v229, 7
    %v231 = vsub.s32 0, %v230
    %v232 = vrot.slane %v187, %v231
    %v241 = vmul.f32 %v191, %v204
    %v242 = vmul.f32 %v191, %v208
    %v243 = vmul.f32 %v191, %v212
    %v244 = vmul.f32 %v191, %v216
    %v245 = vmul.f32 %v191, %v220
    %v246 = vmul.f32 %v191, %v224
    %v247 = vmul.f32 %v191, %v228
    %v248 = vmul.f32 %v191, %v232
    %v249 = vadd.f32 %v169, %v241
    %v250 = vadd.f32 %v170, %v242
    %v251 = vadd.f32 %v171, %v243
    %v252 = vadd.f32 %v172, %v244
    %v253 = vadd.f32 %v173, %v245
    %v254 = vadd.f32 %v174, %v246
    %v255 = vadd.f32 %v175, %v247
    %v256 = vadd.f32 %v176, %v248
    %s257 = scalar_lea.vmem %s1, 24
    %v258 = vld [vmem:[%s257] sm:$0xff]
    %s259 = scalar_lea.vmem %s0, 24
    %v260 = vld [vmem:[%s259] sm:$0x1]
    %v261 = vld [vmem:[%s259 + $0x1] sm:$0x1]
    %v262 = vld [vmem:[%s259 + $0x2] sm:$0x1]
    %v263 = vld [vmem:[%s259 + $0x3] sm:$0x1]
    %v264 = vld [vmem:[%s259 + $0x4] sm:$0x1]
    %v265 = vld [vmem:[%s259 + $0x5] sm:$0x1]
    %v266 = vld [vmem:[%s259 + $0x6] sm:$0x1]
    %v267 = vld [vmem:[%s259 + $0x7] sm:$0x1]
    %269 = vset.pattern.permute.xlu0 0
    %270 = vperm.xlu0 %269, %v258
    %v271 = vpop.permute.xlu0 %270
    %v281 = vlaneseq
    %v282 = vshrl.u32 %v281, 7
    %v283 = vsub.s32 0, %v282
    %v284 = vrot.slane %v260, %v283
    %v285 = vlaneseq
    %v286 = vshrl.u32 %v285, 7
    %v287 = vsub.s32 0, %v286
    %v288 = vrot.slane %v261, %v287
    %v289 = vlaneseq
    %v290 = vshrl.u32 %v289, 7
    %v291 = vsub.s32 0, %v290
    %v292 = vrot.slane %v262, %v291
    %v293 = vlaneseq
    %v294 = vshrl.u32 %v293, 7
    %v295 = vsub.s32 0, %v294
    %v296 = vrot.slane %v263, %v295
    %v297 = vlaneseq
    %v298 = vshrl.u32 %v297, 7
    %v299 = vsub.s32 0, %v298
    %v300 = vrot.slane %v264, %v299
    %v301 = vlaneseq
    %v302 = vshrl.u32 %v301, 7
    %v303 = vsub.s32 0, %v302
    %v304 = vrot.slane %v265, %v303
    %v305 = vlaneseq
    %v306 = vshrl.u32 %v305, 7
    %v307 = vsub.s32 0, %v306
    %v308 = vrot.slane %v266, %v307
    %v309 = vlaneseq
    %v310 = vshrl.u32 %v309, 7
    %v311 = vsub.s32 0, %v310
    %v312 = vrot.slane %v267, %v311
    %v321 = vmul.f32 %v271, %v284
    %v322 = vmul.f32 %v271, %v288
    %v323 = vmul.f32 %v271, %v292
    %v324 = vmul.f32 %v271, %v296
    %v325 = vmul.f32 %v271, %v300
    %v326 = vmul.f32 %v271, %v304
    %v327 = vmul.f32 %v271, %v308
    %v328 = vmul.f32 %v271, %v312
    %v329 = vadd.f32 %v249, %v321
    %v330 = vadd.f32 %v250, %v322
    %v331 = vadd.f32 %v251, %v323
    %v332 = vadd.f32 %v252, %v324
    %v333 = vadd.f32 %v253, %v325
    %v334 = vadd.f32 %v254, %v326
    %v335 = vadd.f32 %v255, %v327
    %v336 = vadd.f32 %v256, %v328
    %s337 = scalar_lea.vmem %s1, 32
    %v338 = vld [vmem:[%s337] sm:$0xff]
    %s339 = scalar_lea.vmem %s0, 32
    %v340 = vld [vmem:[%s339] sm:$0x1]
    %v341 = vld [vmem:[%s339 + $0x1] sm:$0x1]
    %v342 = vld [vmem:[%s339 + $0x2] sm:$0x1]
    %v343 = vld [vmem:[%s339 + $0x3] sm:$0x1]
    %v344 = vld [vmem:[%s339 + $0x4] sm:$0x1]
    %v345 = vld [vmem:[%s339 + $0x5] sm:$0x1]
    %v346 = vld [vmem:[%s339 + $0x6] sm:$0x1]
    %v347 = vld [vmem:[%s339 + $0x7] sm:$0x1]
    %349 = vset.pattern.permute.xlu0 0
    %350 = vperm.xlu0 %349, %v338
    %v351 = vpop.permute.xlu0 %350
    %v361 = vlaneseq
    %v362 = vshrl.u32 %v361, 7
    %v363 = vsub.s32 0, %v362
    %v364 = vrot.slane %v340, %v363
    %v365 = vlaneseq
    %v366 = vshrl.u32 %v365, 7
    %v367 = vsub.s32 0, %v366
    %v368 = vrot.slane %v341, %v367
    %v369 = vlaneseq
    %v370 = vshrl.u32 %v369, 7
    %v371 = vsub.s32 0, %v370
    %v372 = vrot.slane %v342, %v371
    %v373 = vlaneseq
    %v374 = vshrl.u32 %v373, 7
    %v375 = vsub.s32 0, %v374
    %v376 = vrot.slane %v343, %v375
    %v377 = vlaneseq
    %v378 = vshrl.u32 %v377, 7
    %v379 = vsub.s32 0, %v378
    %v380 = vrot.slane %v344, %v379
    %v381 = vlaneseq
    %v382 = vshrl.u32 %v381, 7
    %v383 = vsub.s32 0, %v382
    %v384 = vrot.slane %v345, %v383
    %v385 = vlaneseq
    %v386 = vshrl.u32 %v385, 7
    %v387 = vsub.s32 0, %v386
    %v388 = vrot.slane %v346, %v387
    %v389 = vlaneseq
    %v390 = vshrl.u32 %v389, 7
    %v391 = vsub.s32 0, %v390
    %v392 = vrot.slane %v347, %v391
    %v401 = vmul.f32 %v351, %v364
    %v402 = vmul.f32 %v351, %v368
    %v403 = vmul.f32 %v351, %v372
    %v404 = vmul.f32 %v351, %v376
    %v405 = vmul.f32 %v351, %v380
    %v406 = vmul.f32 %v351, %v384
    %v407 = vmul.f32 %v351, %v388
    %v408 = vmul.f32 %v351, %v392
    %v409 = vadd.f32 %v329, %v401
    %v410 = vadd.f32 %v330, %v402
    %v411 = vadd.f32 %v331, %v403
    %v412 = vadd.f32 %v332, %v404
    %v413 = vadd.f32 %v333, %v405
    %v414 = vadd.f32 %v334, %v406
    %v415 = vadd.f32 %v335, %v407
    %v416 = vadd.f32 %v336, %v408
    %s417 = scalar_lea.vmem %s1, 40
    %v418 = vld [vmem:[%s417] sm:$0xff]
    %s419 = scalar_lea.vmem %s0, 40
    %v420 = vld [vmem:[%s419] sm:$0x1]
    %v421 = vld [vmem:[%s419 + $0x1] sm:$0x1]
    %v422 = vld [vmem:[%s419 + $0x2] sm:$0x1]
    %v423 = vld [vmem:[%s419 + $0x3] sm:$0x1]
    %v424 = vld [vmem:[%s419 + $0x4] sm:$0x1]
    %v425 = vld [vmem:[%s419 + $0x5] sm:$0x1]
    %v426 = vld [vmem:[%s419 + $0x6] sm:$0x1]
    %v427 = vld [vmem:[%s419 + $0x7] sm:$0x1]
    %429 = vset.pattern.permute.xlu0 0
    %430 = vperm.xlu0 %429, %v418
    %v431 = vpop.permute.xlu0 %430
    %v441 = vlaneseq
    %v442 = vshrl.u32 %v441, 7
    %v443 = vsub.s32 0, %v442
    %v444 = vrot.slane %v420, %v443
    %v445 = vlaneseq
    %v446 = vshrl.u32 %v445, 7
    %v447 = vsub.s32 0, %v446
    %v448 = vrot.slane %v421, %v447
    %v449 = vlaneseq
    %v450 = vshrl.u32 %v449, 7
    %v451 = vsub.s32 0, %v450
    %v452 = vrot.slane %v422, %v451
    %v453 = vlaneseq
    %v454 = vshrl.u32 %v453, 7
    %v455 = vsub.s32 0, %v454
    %v456 = vrot.slane %v423, %v455
    %v457 = vlaneseq
    %v458 = vshrl.u32 %v457, 7
    %v459 = vsub.s32 0, %v458
    %v460 = vrot.slane %v424, %v459
    %v461 = vlaneseq
    %v462 = vshrl.u32 %v461, 7
    %v463 = vsub.s32 0, %v462
    %v464 = vrot.slane %v425, %v463
    %v465 = vlaneseq
    %v466 = vshrl.u32 %v465, 7
    %v467 = vsub.s32 0, %v466
    %v468 = vrot.slane %v426, %v467
    %v469 = vlaneseq
    %v470 = vshrl.u32 %v469, 7
    %v471 = vsub.s32 0, %v470
    %v472 = vrot.slane %v427, %v471
    %v481 = vmul.f32 %v431, %v444
    %v482 = vmul.f32 %v431, %v448
    %v483 = vmul.f32 %v431, %v452
    %v484 = vmul.f32 %v431, %v456
    %v485 = vmul.f32 %v431, %v460
    %v486 = vmul.f32 %v431, %v464
    %v487 = vmul.f32 %v431, %v468
    %v488 = vmul.f32 %v431, %v472
    %v489 = vadd.f32 %v409, %v481
    %v490 = vadd.f32 %v410, %v482
    %v491 = vadd.f32 %v411, %v483
    %v492 = vadd.f32 %v412, %v484
    %v493 = vadd.f32 %v413, %v485
    %v494 = vadd.f32 %v414, %v486
    %v495 = vadd.f32 %v415, %v487
    %v496 = vadd.f32 %v416, %v488
    %s497 = scalar_lea.vmem %s1, 48
    %v498 = vld [vmem:[%s497] sm:$0xff]
    %s499 = scalar_lea.vmem %s0, 48
    %v500 = vld [vmem:[%s499] sm:$0x1]
    %v501 = vld [vmem:[%s499 + $0x1] sm:$0x1]
    %v502 = vld [vmem:[%s499 + $0x2] sm:$0x1]
    %v503 = vld [vmem:[%s499 + $0x3] sm:$0x1]
    %v504 = vld [vmem:[%s499 + $0x4] sm:$0x1]
    %v505 = vld [vmem:[%s499 + $0x5] sm:$0x1]
    %v506 = vld [vmem:[%s499 + $0x6] sm:$0x1]
    %v507 = vld [vmem:[%s499 + $0x7] sm:$0x1]
    %509 = vset.pattern.permute.xlu0 0
    %510 = vperm.xlu0 %509, %v498
    %v511 = vpop.permute.xlu0 %510
    %v521 = vlaneseq
    %v522 = vshrl.u32 %v521, 7
    %v523 = vsub.s32 0, %v522
    %v524 = vrot.slane %v500, %v523
    %v525 = vlaneseq
    %v526 = vshrl.u32 %v525, 7
    %v527 = vsub.s32 0, %v526
    %v528 = vrot.slane %v501, %v527
    %v529 = vlaneseq
    %v530 = vshrl.u32 %v529, 7
    %v531 = vsub.s32 0, %v530
    %v532 = vrot.slane %v502, %v531
    %v533 = vlaneseq
    %v534 = vshrl.u32 %v533, 7
    %v535 = vsub.s32 0, %v534
    %v536 = vrot.slane %v503, %v535
    %v537 = vlaneseq
    %v538 = vshrl.u32 %v537, 7
    %v539 = vsub.s32 0, %v538
    %v540 = vrot.slane %v504, %v539
    %v541 = vlaneseq
    %v542 = vshrl.u32 %v541, 7
    %v543 = vsub.s32 0, %v542
    %v544 = vrot.slane %v505, %v543
    %v545 = vlaneseq
    %v546 = vshrl.u32 %v545, 7
    %v547 = vsub.s32 0, %v546
    %v548 = vrot.slane %v506, %v547
    %v549 = vlaneseq
    %v550 = vshrl.u32 %v549, 7
    %v551 = vsub.s32 0, %v550
    %v552 = vrot.slane %v507, %v551
    %v561 = vmul.f32 %v511, %v524
    %v562 = vmul.f32 %v511, %v528
    %v563 = vmul.f32 %v511, %v532
    %v564 = vmul.f32 %v511, %v536
    %v565 = vmul.f32 %v511, %v540
    %v566 = vmul.f32 %v511, %v544
    %v567 = vmul.f32 %v511, %v548
    %v568 = vmul.f32 %v511, %v552
    %v569 = vadd.f32 %v489, %v561
    %v570 = vadd.f32 %v490, %v562
    %v571 = vadd.f32 %v491, %v563
    %v572 = vadd.f32 %v492, %v564
    %v573 = vadd.f32 %v493, %v565
    %v574 = vadd.f32 %v494, %v566
    %v575 = vadd.f32 %v495, %v567
    %v576 = vadd.f32 %v496, %v568
    %s577 = scalar_lea.vmem %s1, 56
    %v578 = vld [vmem:[%s577] sm:$0xff]
    %s579 = scalar_lea.vmem %s0, 56
    %v580 = vld [vmem:[%s579] sm:$0x1]
    %v581 = vld [vmem:[%s579 + $0x1] sm:$0x1]
    %v582 = vld [vmem:[%s579 + $0x2] sm:$0x1]
    %v583 = vld [vmem:[%s579 + $0x3] sm:$0x1]
    %v584 = vld [vmem:[%s579 + $0x4] sm:$0x1]
    %v585 = vld [vmem:[%s579 + $0x5] sm:$0x1]
    %v586 = vld [vmem:[%s579 + $0x6] sm:$0x1]
    %v587 = vld [vmem:[%s579 + $0x7] sm:$0x1]
    %589 = vset.pattern.permute.xlu0 0
    %590 = vperm.xlu0 %589, %v578
    %v591 = vpop.permute.xlu0 %590
    %v601 = vlaneseq
    %v602 = vshrl.u32 %v601, 7
    %v603 = vsub.s32 0, %v602
    %v604 = vrot.slane %v580, %v603
    %v605 = vlaneseq
    %v606 = vshrl.u32 %v605, 7
    %v607 = vsub.s32 0, %v606
    %v608 = vrot.slane %v581, %v607
    %v609 = vlaneseq
    %v610 = vshrl.u32 %v609, 7
    %v611 = vsub.s32 0, %v610
    %v612 = vrot.slane %v582, %v611
    %v613 = vlaneseq
    %v614 = vshrl.u32 %v613, 7
    %v615 = vsub.s32 0, %v614
    %v616 = vrot.slane %v583, %v615
    %v617 = vlaneseq
    %v618 = vshrl.u32 %v617, 7
    %v619 = vsub.s32 0, %v618
    %v620 = vrot.slane %v584, %v619
    %v621 = vlaneseq
    %v622 = vshrl.u32 %v621, 7
    %v623 = vsub.s32 0, %v622
    %v624 = vrot.slane %v585, %v623
    %v625 = vlaneseq
    %v626 = vshrl.u32 %v625, 7
    %v627 = vsub.s32 0, %v626
    %v628 = vrot.slane %v586, %v627
    %v629 = vlaneseq
    %v630 = vshrl.u32 %v629, 7
    %v631 = vsub.s32 0, %v630
    %v632 = vrot.slane %v587, %v631
    %v641 = vmul.f32 %v591, %v604
    %v642 = vmul.f32 %v591, %v608
    %v643 = vmul.f32 %v591, %v612
    %v644 = vmul.f32 %v591, %v616
    %v645 = vmul.f32 %v591, %v620
    %v646 = vmul.f32 %v591, %v624
    %v647 = vmul.f32 %v591, %v628
    %v648 = vmul.f32 %v591, %v632
    %v649 = vadd.f32 %v569, %v641
    %v650 = vadd.f32 %v570, %v642
    %v651 = vadd.f32 %v571, %v643
    %v652 = vadd.f32 %v572, %v644
    %v653 = vadd.f32 %v573, %v645
    %v654 = vadd.f32 %v574, %v646
    %v655 = vadd.f32 %v575, %v647
    %v656 = vadd.f32 %v576, %v648
    %s657 = scalar_lea.vmem %s1, 64
    %v658 = vld [vmem:[%s657] sm:$0xff]
    %s659 = scalar_lea.vmem %s0, 64
    %v660 = vld [vmem:[%s659] sm:$0x1]
    %v661 = vld [vmem:[%s659 + $0x1] sm:$0x1]
    %v662 = vld [vmem:[%s659 + $0x2] sm:$0x1]
    %v663 = vld [vmem:[%s659 + $0x3] sm:$0x1]
    %v664 = vld [vmem:[%s659 + $0x4] sm:$0x1]
    %v665 = vld [vmem:[%s659 + $0x5] sm:$0x1]
    %v666 = vld [vmem:[%s659 + $0x6] sm:$0x1]
    %v667 = vld [vmem:[%s659 + $0x7] sm:$0x1]
    %669 = vset.pattern.permute.xlu0 0
    %670 = vperm.xlu0 %669, %v658
    %v671 = vpop.permute.xlu0 %670
    %v681 = vlaneseq
    %v682 = vshrl.u32 %v681, 7
    %v683 = vsub.s32 0, %v682
    %v684 = vrot.slane %v660, %v683
    %v685 = vlaneseq
    %v686 = vshrl.u32 %v685, 7
    %v687 = vsub.s32 0, %v686
    %v688 = vrot.slane %v661, %v687
    %v689 = vlaneseq
    %v690 = vshrl.u32 %v689, 7
    %v691 = vsub.s32 0, %v690
    %v692 = vrot.slane %v662, %v691
    %v693 = vlaneseq
    %v694 = vshrl.u32 %v693, 7
    %v695 = vsub.s32 0, %v694
    %v696 = vrot.slane %v663, %v695
    %v697 = vlaneseq
    %v698 = vshrl.u32 %v697, 7
    %v699 = vsub.s32 0, %v698
    %v700 = vrot.slane %v664, %v699
    %v701 = vlaneseq
    %v702 = vshrl.u32 %v701, 7
    %v703 = vsub.s32 0, %v702
    %v704 = vrot.slane %v665, %v703
    %v705 = vlaneseq
    %v706 = vshrl.u32 %v705, 7
    %v707 = vsub.s32 0, %v706
    %v708 = vrot.slane %v666, %v707
    %v709 = vlaneseq
    %v710 = vshrl.u32 %v709, 7
    %v711 = vsub.s32 0, %v710
    %v712 = vrot.slane %v667, %v711
    %v721 = vmul.f32 %v671, %v684
    %v722 = vmul.f32 %v671, %v688
    %v723 = vmul.f32 %v671, %v692
    %v724 = vmul.f32 %v671, %v696
    %v725 = vmul.f32 %v671, %v700
    %v726 = vmul.f32 %v671, %v704
    %v727 = vmul.f32 %v671, %v708
    %v728 = vmul.f32 %v671, %v712
    %v729 = vadd.f32 %v649, %v721
    %v730 = vadd.f32 %v650, %v722
    %v731 = vadd.f32 %v651, %v723
    %v732 = vadd.f32 %v652, %v724
    %v733 = vadd.f32 %v653, %v725
    %v734 = vadd.f32 %v654, %v726
    %v735 = vadd.f32 %v655, %v727
    %v736 = vadd.f32 %v656, %v728
    %v737 = vld [vmem:[%s2] sm:$0xff]
    %739 = vset.pattern.permute.xlu0 0
    %740 = vperm.xlu0 %739, %v737
    %v741 = vpop.permute.xlu0 %740
    %v743 = vadd.f32 %v729, %v741
    %v744 = vadd.f32 %v730, %v741
    %v745 = vadd.f32 %v731, %v741
    %v746 = vadd.f32 %v732, %v741
    %v747 = vadd.f32 %v733, %v741
    %v748 = vadd.f32 %v734, %v741
    %v749 = vadd.f32 %v735, %v741
    %v750 = vadd.f32 %v736, %v741
    %vm751 = vcmask 400384
    %v752 = vsel %vm751, %v743, 0.0
    %753 = vadd.xlane.f32.xlu0 %v752
    %v754 = vpop.xlane.xlu0 %753
    %v755 = vsel %vm751, %v744, 0.0
    %756 = vadd.xlane.f32.xlu0 %v755
    %v757 = vpop.xlane.xlu0 %756
    %v758 = vsel %vm751, %v745, 0.0
    %759 = vadd.xlane.f32.xlu0 %v758
    %v760 = vpop.xlane.xlu0 %759
    %v761 = vsel %vm751, %v746, 0.0
    %762 = vadd.xlane.f32.xlu0 %v761
    %v763 = vpop.xlane.xlu0 %762
    %v764 = vsel %vm751, %v747, 0.0
    %765 = vadd.xlane.f32.xlu0 %v764
    %v766 = vpop.xlane.xlu0 %765
    %v767 = vsel %vm751, %v748, 0.0
    %768 = vadd.xlane.f32.xlu0 %v767
    %v769 = vpop.xlane.xlu0 %768
    %v770 = vsel %vm751, %v749, 0.0
    %771 = vadd.xlane.f32.xlu0 %v770
    %v772 = vpop.xlane.xlu0 %771
    %v773 = vsel %vm751, %v750, 0.0
    %774 = vadd.xlane.f32.xlu0 %v773
    %v775 = vpop.xlane.xlu0 %774
    %v776 = vadd.f32 %v754, %v757
    %v777 = vadd.f32 %v776, %v760
    %v778 = vadd.f32 %v777, %v763
    %v779 = vadd.f32 %v778, %v766
    %v780 = vadd.f32 %v779, %v769
    %v781 = vadd.f32 %v780, %v772
    %v782 = vadd.f32 %v781, %v775
    %v783 = vmul.f32 %v782, 0.0025510204
    %v784 = vsub.f32 %v743, %v783
    %v785 = vsub.f32 %v744, %v783
    %v786 = vsub.f32 %v745, %v783
    %v787 = vsub.f32 %v746, %v783
    %v788 = vsub.f32 %v747, %v783
    %v789 = vsub.f32 %v748, %v783
    %v790 = vsub.f32 %v749, %v783
    %v791 = vsub.f32 %v750, %v783
    %v792 = vmul.f32 %v784, %v784
    %v793 = vmul.f32 %v785, %v785
    %v794 = vmul.f32 %v786, %v786
    %v795 = vmul.f32 %v787, %v787
    %v796 = vmul.f32 %v788, %v788
    %v797 = vmul.f32 %v789, %v789
    %v798 = vmul.f32 %v790, %v790
    %v799 = vmul.f32 %v791, %v791
    %v800 = vsel %vm751, %v792, 0.0
    %801 = vadd.xlane.f32.xlu0 %v800
    %v802 = vpop.xlane.xlu0 %801
    %v803 = vsel %vm751, %v793, 0.0
    %804 = vadd.xlane.f32.xlu0 %v803
    %v805 = vpop.xlane.xlu0 %804
    %v806 = vsel %vm751, %v794, 0.0
    %807 = vadd.xlane.f32.xlu0 %v806
    %v808 = vpop.xlane.xlu0 %807
    %v809 = vsel %vm751, %v795, 0.0
    %810 = vadd.xlane.f32.xlu0 %v809
    %v811 = vpop.xlane.xlu0 %810
    %v812 = vsel %vm751, %v796, 0.0
    %813 = vadd.xlane.f32.xlu0 %v812
    %v814 = vpop.xlane.xlu0 %813
    %v815 = vsel %vm751, %v797, 0.0
    %816 = vadd.xlane.f32.xlu0 %v815
    %v817 = vpop.xlane.xlu0 %816
    %v818 = vsel %vm751, %v798, 0.0
    %819 = vadd.xlane.f32.xlu0 %v818
    %v820 = vpop.xlane.xlu0 %819
    %v821 = vsel %vm751, %v799, 0.0
    %822 = vadd.xlane.f32.xlu0 %v821
    %v823 = vpop.xlane.xlu0 %822
    %v824 = vadd.f32 %v802, %v805
    %v825 = vadd.f32 %v824, %v808
    %v826 = vadd.f32 %v825, %v811
    %v827 = vadd.f32 %v826, %v814
    %v828 = vadd.f32 %v827, %v817
    %v829 = vadd.f32 %v828, %v820
    %v830 = vadd.f32 %v829, %v823
    %v831 = vmul.f32 %v830, 0.0025510204
    %v832 = vld [vmem:[%s3] sm:$0xff]
    %v833 = vadd.f32 %v831, 1e-05
    %v834 = vrsqrt.pop %v833
    %v835 = vmul.f32 %v832, %v834
    %837 = vset.pattern.permute.xlu0 0
    %838 = vperm.xlu0 %837, %v835
    %v839 = vpop.permute.xlu0 %838
    %v841 = vmul.f32 %v784, %v839
    %v842 = vmul.f32 %v785, %v839
    %v843 = vmul.f32 %v786, %v839
    %v844 = vmul.f32 %v787, %v839
    %v845 = vmul.f32 %v788, %v839
    %v846 = vmul.f32 %v789, %v839
    %v847 = vmul.f32 %v790, %v839
    %v848 = vmul.f32 %v791, %v839
    %v849 = vld [vmem:[%s4] sm:$0xff]
    %851 = vset.pattern.permute.xlu0 0
    %852 = vperm.xlu0 %851, %v849
    %v853 = vpop.permute.xlu0 %852
    %v855 = vadd.f32 %v841, %v853
    %v856 = vadd.f32 %v842, %v853
    %v857 = vadd.f32 %v843, %v853
    %v858 = vadd.f32 %v844, %v853
    %v859 = vadd.f32 %v845, %v853
    %v860 = vadd.f32 %v846, %v853
    %v861 = vadd.f32 %v847, %v853
    %v862 = vadd.f32 %v848, %v853
    %v863 = vmax.f32 %v855, 0.0
    %v864 = vmax.f32 %v856, 0.0
    %v865 = vmax.f32 %v857, 0.0
    %v866 = vmax.f32 %v858, 0.0
    %v867 = vmax.f32 %v859, 0.0
    %v868 = vmax.f32 %v860, 0.0
    %v869 = vmax.f32 %v861, 0.0
    %v870 = vmax.f32 %v862, 0.0
    %v871 = vmax.f32 %v863, %v865
    %v872 = vmax.f32 %v864, %v866
    %v873 = vmax.f32 %v867, %v869
    %v874 = vmax.f32 %v868, %v870
    %v875 = vmax.f32 %v871, %v873
    %v876 = vmax.f32 %v872, %v874
    %v877 = vld [vmem:[%s6] sm:$0x1]
    %v878 = vld [vmem:[%s5] sm:$0xff]
    %v879 = vld [vmem:[%s5 + $0x8] sm:$0xff]
    %v880 = vld [vmem:[%s5 + $0x10] sm:$0xff]
    %v881 = vld [vmem:[%s5 + $0x18] sm:$0xff]
    %v882 = vld [vmem:[%s5 + $0x20] sm:$0xff]
    %v883 = vld [vmem:[%s5 + $0x28] sm:$0xff]
    %v884 = vld [vmem:[%s5 + $0x30] sm:$0x1]
    %s885 = scalar_lea.vmem %s5, 56
    %v886 = vld [vmem:[%s885] sm:$0xff]
    %v887 = vld [vmem:[%s885 + $0x8] sm:$0xff]
    %v888 = vld [vmem:[%s885 + $0x10] sm:$0xff]
    %v889 = vld [vmem:[%s885 + $0x18] sm:$0xff]
    %v890 = vld [vmem:[%s885 + $0x20] sm:$0xff]
    %v891 = vld [vmem:[%s885 + $0x28] sm:$0xff]
    %v892 = vld [vmem:[%s885 + $0x30] sm:$0x1]
    %v894 = vrot.slane %v875, 1
    %v895 = vsel %vm751, %v894, 0
    %vm897 = vcmask 1040384
    %v899 = vsel %vm897, %v892, 0
    %901 = vmatprep.subr.mxu0 0.0
    %902 = vmatpush1.msra.mxu0 %v886
    %903 = vmatprep.subr.mxu0 0.0
    %904 = vmatpush1.msra.mxu0 %v887
    %905 = vmatprep.subr.mxu0 0.0
    %906 = vmatpush1.msra.mxu0 %v888
    %907 = vmatprep.subr.mxu0 0.0
    %908 = vmatpush1.msra.mxu0 %v889
    %909 = vmatprep.subr.mxu0 0.0
    %910 = vmatpush1.msra.mxu0 %v890
    %911 = vmatprep.subr.mxu0 0.0
    %912 = vmatpush1.msra.mxu0 %v891
    %913 = vmatprep.subr.mxu0 0.0
    %914 = vmatpush1.msra.mxu0 %v899
    %915 = vmatprep.subr.mxu0 0.0
    %916 = vmatpush1.msra.mxu0 0.0
    %917 = vmatprep.subr.mxu0 0.0
    %918 = vmatpush1.msra.mxu0 0.0
    %919 = vmatprep.subr.mxu0 0.0
    %920 = vmatpush1.msra.mxu0 0.0
    %921 = vmatprep.subr.mxu0 0.0
    %922 = vmatpush1.msra.mxu0 0.0
    %923 = vmatprep.subr.mxu0 0.0
    %924 = vmatpush1.msra.mxu0 0.0
    %925 = vmatprep.subr.mxu0 0.0
    %926 = vmatpush1.msra.mxu0 0.0
    %927 = vmatprep.subr.mxu0 0.0
    %928 = vmatpush1.msra.mxu0 0.0
    %929 = vmatprep.subr.mxu0 0.0
    %930 = vmatpush1.msra.mxu0 0.0
    %931 = vmatprep.subr.mxu0 0.0
    %932 = vmatpush1.msra.mxu0 0.0
    %933 = vmatprep.subr.mxu0 0.0
    %934 = vmatpush1.msra.mxu0 0.0
    %935 = vmatprep.subr.mxu0 0.0
    %936 = vmatpush1.msra.mxu0 0.0
    %937 = vmatprep.subr.mxu0 0.0
    %938 = vmatpush1.msra.mxu0 0.0
    %939 = vmatprep.subr.mxu0 0.0
    %940 = vmatpush1.msra.mxu0 0.0
    %941 = vmatprep.subr.mxu0 0.0
    %942 = vmatpush1.msra.mxu0 0.0
    %943 = vmatprep.subr.mxu0 0.0
    %944 = vmatpush1.msra.mxu0 0.0
    %945 = vmatprep.subr.mxu0 0.0
    %946 = vmatpush1.msra.mxu0 0.0
    %947 = vmatprep.subr.mxu0 0.0
    %948 = vmatpush1.msra.mxu0 0.0
    %949 = vmatprep.subr.mxu0 0.0
    %950 = vmatpush1.msra.mxu0 0.0
    %951 = vmatprep.subr.mxu0 0.0
    %952 = vmatpush1.msra.mxu0 0.0
    %953 = vmatprep.subr.mxu0 0.0
    %954 = vmatpush1.msra.mxu0 0.0
    %955 = vmatprep.subr.mxu0 0.0
    %956 = vmatpush1.msra.mxu0 0.0
    %957 = vmatprep.subr.mxu0 0.0
    %958 = vmatpush1.msra.mxu0 0.0
    %959 = vmatprep.subr.mxu0 0.0
    %960 = vmatpush1.msra.mxu0 0.0
    %961 = vmatprep.subr.mxu0 0.0
    %962 = vmatpush1.msra.mxu0 0.0
    %963 = vmatprep.subr.mxu0 0.0
    %964 = vmatpush1.msra.mxu0 0.0
    %965 = vmatprep.mubr.f32.mxu0 0.0
    %966 = vmatmul.mubr.f32.gmra.mrb[0].mxu0 %v895
    %v967 = vpop.f32.mrb[0].mxu0
    %v968 = vadd.f32 0.0, %v967
    %v969 = vpop.f32.mrb[0].mxu0
    %970 = vdwg.mxu0
    %v971 = vsel %vm751, %v875, 0
    %v974 = vsel %vm897, %v884, 0
    %976 = vmatprep.subr.mxu0 0.0
    %977 = vmatpush1.msra.mxu0 %v878
    %978 = vmatprep.subr.mxu0 0.0
    %979 = vmatpush1.msra.mxu0 %v879
    %980 = vmatprep.subr.mxu0 0.0
    %981 = vmatpush1.msra.mxu0 %v880
    %982 = vmatprep.subr.mxu0 0.0
    %983 = vmatpush1.msra.mxu0 %v881
    %984 = vmatprep.subr.mxu0 0.0
    %985 = vmatpush1.msra.mxu0 %v882
    %986 = vmatprep.subr.mxu0 0.0
    %987 = vmatpush1.msra.mxu0 %v883
    %988 = vmatprep.subr.mxu0 0.0
    %989 = vmatpush1.msra.mxu0 %v974
    %990 = vmatprep.subr.mxu0 0.0
    %991 = vmatpush1.msra.mxu0 0.0
    %992 = vmatprep.subr.mxu0 0.0
    %993 = vmatpush1.msra.mxu0 0.0
    %994 = vmatprep.subr.mxu0 0.0
    %995 = vmatpush1.msra.mxu0 0.0
    %996 = vmatprep.subr.mxu0 0.0
    %997 = vmatpush1.msra.mxu0 0.0
    %998 = vmatprep.subr.mxu0 0.0
    %999 = vmatpush1.msra.mxu0 0.0
    %1000 = vmatprep.subr.mxu0 0.0
    %1001 = vmatpush1.msra.mxu0 0.0
    %1002 = vmatprep.subr.mxu0 0.0
    %1003 = vmatpush1.msra.mxu0 0.0
    %1004 = vmatprep.subr.mxu0 0.0
    %1005 = vmatpush1.msra.mxu0 0.0
    %1006 = vmatprep.subr.mxu0 0.0
    %1007 = vmatpush1.msra.mxu0 0.0
    %1008 = vmatprep.subr.mxu0 0.0
    %1009 = vmatpush1.msra.mxu0 0.0
    %1010 = vmatprep.subr.mxu0 0.0
    %1011 = vmatpush1.msra.mxu0 0.0
    %1012 = vmatprep.subr.mxu0 0.0
    %1013 = vmatpush1.msra.mxu0 0.0
    %1014 = vmatprep.subr.mxu0 0.0
    %1015 = vmatpush1.msra.mxu0 0.0
    %1016 = vmatprep.subr.mxu0 0.0
    %1017 = vmatpush1.msra.mxu0 0.0
    %1018 = vmatprep.subr.mxu0 0.0
    %1019 = vmatpush1.msra.mxu0 0.0
    %1020 = vmatprep.subr.mxu0 0.0
    %1021 = vmatpush1.msra.mxu0 0.0
    %1022 = vmatprep.subr.mxu0 0.0
    %1023 = vmatpush1.msra.mxu0 0.0
    %1024 = vmatprep.subr.mxu0 0.0
    %1025 = vmatpush1.msra.mxu0 0.0
    %1026 = vmatprep.subr.mxu0 0.0
    %1027 = vmatpush1.msra.mxu0 0.0
    %1028 = vmatprep.subr.mxu0 0.0
    %1029 = vmatpush1.msra.mxu0 0.0
    %1030 = vmatprep.subr.mxu0 0.0
    %1031 = vmatpush1.msra.mxu0 0.0
    %1032 = vmatprep.subr.mxu0 0.0
    %1033 = vmatpush1.msra.mxu0 0.0
    %1034 = vmatprep.subr.mxu0 0.0
    %1035 = vmatpush1.msra.mxu0 0.0
    %1036 = vmatprep.subr.mxu0 0.0
    %1037 = vmatpush1.msra.mxu0 0.0
    %1038 = vmatprep.subr.mxu0 0.0
    %1039 = vmatpush1.msra.mxu0 0.0
    %1040 = vmatprep.mubr.f32.mxu0 0.0
    %1041 = vmatmul.mubr.f32.gmra.mrb[0].mxu0 %v971
    %v1042 = vpop.f32.mrb[0].mxu0
    %v1043 = vadd.f32 %v968, %v1042
    %v1044 = vpop.f32.mrb[0].mxu0
    %1045 = vdwg.mxu0
    %v1047 = vrot.slane %v876, 1
    %v1048 = vsel %vm751, %v1047, 0
    %1050 = vmatprep.subr.mxu0 0.0
    %1051 = vmatpush1.msra.mxu0 %v886
    %1052 = vmatprep.subr.mxu0 0.0
    %1053 = vmatpush1.msra.mxu0 %v887
    %1054 = vmatprep.subr.mxu0 0.0
    %1055 = vmatpush1.msra.mxu0 %v888
    %1056 = vmatprep.subr.mxu0 0.0
    %1057 = vmatpush1.msra.mxu0 %v889
    %1058 = vmatprep.subr.mxu0 0.0
    %1059 = vmatpush1.msra.mxu0 %v890
    %1060 = vmatprep.subr.mxu0 0.0
    %1061 = vmatpush1.msra.mxu0 %v891
    %1062 = vmatprep.subr.mxu0 0.0
    %1063 = vmatpush1.msra.mxu0 %v899
    %1064 = vmatprep.subr.mxu0 0.0
    %1065 = vmatpush1.msra.mxu0 0.0
    %1066 = vmatprep.subr.mxu0 0.0
    %1067 = vmatpush1.msra.mxu0 0.0
    %1068 = vmatprep.subr.mxu0 0.0
    %1069 = vmatpush1.msra.mxu0 0.0
    %1070 = vmatprep.subr.mxu0 0.0
    %1071 = vmatpush1.msra.mxu0 0.0
    %1072 = vmatprep.subr.mxu0 0.0
    %1073 = vmatpush1.msra.mxu0 0.0
    %1074 = vmatprep.subr.mxu0 0.0
    %1075 = vmatpush1.msra.mxu0 0.0
    %1076 = vmatprep.subr.mxu0 0.0
    %1077 = vmatpush1.msra.mxu0 0.0
    %1078 = vmatprep.subr.mxu0 0.0
    %1079 = vmatpush1.msra.mxu0 0.0
    %1080 = vmatprep.subr.mxu0 0.0
    %1081 = vmatpush1.msra.mxu0 0.0
    %1082 = vmatprep.subr.mxu0 0.0
    %1083 = vmatpush1.msra.mxu0 0.0
    %1084 = vmatprep.subr.mxu0 0.0
    %1085 = vmatpush1.msra.mxu0 0.0
    %1086 = vmatprep.subr.mxu0 0.0
    %1087 = vmatpush1.msra.mxu0 0.0
    %1088 = vmatprep.subr.mxu0 0.0
    %1089 = vmatpush1.msra.mxu0 0.0
    %1090 = vmatprep.subr.mxu0 0.0
    %1091 = vmatpush1.msra.mxu0 0.0
    %1092 = vmatprep.subr.mxu0 0.0
    %1093 = vmatpush1.msra.mxu0 0.0
    %1094 = vmatprep.subr.mxu0 0.0
    %1095 = vmatpush1.msra.mxu0 0.0
    %1096 = vmatprep.subr.mxu0 0.0
    %1097 = vmatpush1.msra.mxu0 0.0
    %1098 = vmatprep.subr.mxu0 0.0
    %1099 = vmatpush1.msra.mxu0 0.0
    %1100 = vmatprep.subr.mxu0 0.0
    %1101 = vmatpush1.msra.mxu0 0.0
    %1102 = vmatprep.subr.mxu0 0.0
    %1103 = vmatpush1.msra.mxu0 0.0
    %1104 = vmatprep.subr.mxu0 0.0
    %1105 = vmatpush1.msra.mxu0 0.0
    %1106 = vmatprep.subr.mxu0 0.0
    %1107 = vmatpush1.msra.mxu0 0.0
    %1108 = vmatprep.subr.mxu0 0.0
    %1109 = vmatpush1.msra.mxu0 0.0
    %1110 = vmatprep.subr.mxu0 0.0
    %1111 = vmatpush1.msra.mxu0 0.0
    %1112 = vmatprep.subr.mxu0 0.0
    %1113 = vmatpush1.msra.mxu0 0.0
    %1114 = vmatprep.mubr.f32.mxu0 0.0
    %1115 = vmatmul.mubr.f32.gmra.mrb[0].mxu0 %v1048
    %v1116 = vpop.f32.mrb[0].mxu0
    %v1117 = vadd.f32 0.0, %v1116
    %v1118 = vpop.f32.mrb[0].mxu0
    %1119 = vdwg.mxu0
    %v1120 = vsel %vm751, %v876, 0
    %1122 = vmatprep.subr.mxu0 0.0
    %1123 = vmatpush1.msra.mxu0 %v878
    %1124 = vmatprep.subr.mxu0 0.0
    %1125 = vmatpush1.msra.mxu0 %v879
    %1126 = vmatprep.subr.mxu0 0.0
    %1127 = vmatpush1.msra.mxu0 %v880
    %1128 = vmatprep.subr.mxu0 0.0
    %1129 = vmatpush1.msra.mxu0 %v881
    %1130 = vmatprep.subr.mxu0 0.0
    %1131 = vmatpush1.msra.mxu0 %v882
    %1132 = vmatprep.subr.mxu0 0.0
    %1133 = vmatpush1.msra.mxu0 %v883
    %1134 = vmatprep.subr.mxu0 0.0
    %1135 = vmatpush1.msra.mxu0 %v974
    %1136 = vmatprep.subr.mxu0 0.0
    %1137 = vmatpush1.msra.mxu0 0.0
    %1138 = vmatprep.subr.mxu0 0.0
    %1139 = vmatpush1.msra.mxu0 0.0
    %1140 = vmatprep.subr.mxu0 0.0
    %1141 = vmatpush1.msra.mxu0 0.0
    %1142 = vmatprep.subr.mxu0 0.0
    %1143 = vmatpush1.msra.mxu0 0.0
    %1144 = vmatprep.subr.mxu0 0.0
    %1145 = vmatpush1.msra.mxu0 0.0
    %1146 = vmatprep.subr.mxu0 0.0
    %1147 = vmatpush1.msra.mxu0 0.0
    %1148 = vmatprep.subr.mxu0 0.0
    %1149 = vmatpush1.msra.mxu0 0.0
    %1150 = vmatprep.subr.mxu0 0.0
    %1151 = vmatpush1.msra.mxu0 0.0
    %1152 = vmatprep.subr.mxu0 0.0
    %1153 = vmatpush1.msra.mxu0 0.0
    %1154 = vmatprep.subr.mxu0 0.0
    %1155 = vmatpush1.msra.mxu0 0.0
    %1156 = vmatprep.subr.mxu0 0.0
    %1157 = vmatpush1.msra.mxu0 0.0
    %1158 = vmatprep.subr.mxu0 0.0
    %1159 = vmatpush1.msra.mxu0 0.0
    %1160 = vmatprep.subr.mxu0 0.0
    %1161 = vmatpush1.msra.mxu0 0.0
    %1162 = vmatprep.subr.mxu0 0.0
    %1163 = vmatpush1.msra.mxu0 0.0
    %1164 = vmatprep.subr.mxu0 0.0
    %1165 = vmatpush1.msra.mxu0 0.0
    %1166 = vmatprep.subr.mxu0 0.0
    %1167 = vmatpush1.msra.mxu0 0.0
    %1168 = vmatprep.subr.mxu0 0.0
    %1169 = vmatpush1.msra.mxu0 0.0
    %1170 = vmatprep.subr.mxu0 0.0
    %1171 = vmatpush1.msra.mxu0 0.0
    %1172 = vmatprep.subr.mxu0 0.0
    %1173 = vmatpush1.msra.mxu0 0.0
    %1174 = vmatprep.subr.mxu0 0.0
    %1175 = vmatpush1.msra.mxu0 0.0
    %1176 = vmatprep.subr.mxu0 0.0
    %1177 = vmatpush1.msra.mxu0 0.0
    %1178 = vmatprep.subr.mxu0 0.0
    %1179 = vmatpush1.msra.mxu0 0.0
    %1180 = vmatprep.subr.mxu0 0.0
    %1181 = vmatpush1.msra.mxu0 0.0
    %1182 = vmatprep.subr.mxu0 0.0
    %1183 = vmatpush1.msra.mxu0 0.0
    %1184 = vmatprep.subr.mxu0 0.0
    %1185 = vmatpush1.msra.mxu0 0.0
    %1186 = vmatprep.mubr.f32.mxu0 0.0
    %1187 = vmatmul.mubr.f32.gmra.mrb[0].mxu0 %v1120
    %v1188 = vpop.f32.mrb[0].mxu0
    %v1189 = vadd.f32 %v1117, %v1188
    %v1190 = vpop.f32.mrb[0].mxu0
    %1191 = vdwg.mxu0
    %s1192 = scalar_lea.vmem %s5, 112
    %v1193 = vld [vmem:[%s1192] sm:$0xff]
    %v1194 = vld [vmem:[%s1192 + $0x8] sm:$0xff]
    %v1195 = vld [vmem:[%s1192 + $0x10] sm:$0xff]
    %v1196 = vld [vmem:[%s1192 + $0x18] sm:$0xff]
    %v1197 = vld [vmem:[%s1192 + $0x20] sm:$0xff]
    %v1198 = vld [vmem:[%s1192 + $0x28] sm:$0xff]
    %v1199 = vld [vmem:[%s1192 + $0x30] sm:$0x1]
    %v1200 = vrot.slane %v875, 2
    %v1201 = vsel %vm751, %v1200, 0
    %v1204 = vsel %vm897, %v1199, 0
    %1206 = vmatprep.subr.mxu0 0.0
    %1207 = vmatpush1.msra.mxu0 %v1193
    %1208 = vmatprep.subr.mxu0 0.0
    %1209 = vmatpush1.msra.mxu0 %v1194
    %1210 = vmatprep.subr.mxu0 0.0
    %1211 = vmatpush1.msra.mxu0 %v1195
    %1212 = vmatprep.subr.mxu0 0.0
    %1213 = vmatpush1.msra.mxu0 %v1196
    %1214 = vmatprep.subr.mxu0 0.0
    %1215 = vmatpush1.msra.mxu0 %v1197
    %1216 = vmatprep.subr.mxu0 0.0
    %1217 = vmatpush1.msra.mxu0 %v1198
    %1218 = vmatprep.subr.mxu0 0.0
    %1219 = vmatpush1.msra.mxu0 %v1204
    %1220 = vmatprep.subr.mxu0 0.0
    %1221 = vmatpush1.msra.mxu0 0.0
    %1222 = vmatprep.subr.mxu0 0.0
    %1223 = vmatpush1.msra.mxu0 0.0
    %1224 = vmatprep.subr.mxu0 0.0
    %1225 = vmatpush1.msra.mxu0 0.0
    %1226 = vmatprep.subr.mxu0 0.0
    %1227 = vmatpush1.msra.mxu0 0.0
    %1228 = vmatprep.subr.mxu0 0.0
    %1229 = vmatpush1.msra.mxu0 0.0
    %1230 = vmatprep.subr.mxu0 0.0
    %1231 = vmatpush1.msra.mxu0 0.0
    %1232 = vmatprep.subr.mxu0 0.0
    %1233 = vmatpush1.msra.mxu0 0.0
    %1234 = vmatprep.subr.mxu0 0.0
    %1235 = vmatpush1.msra.mxu0 0.0
    %1236 = vmatprep.subr.mxu0 0.0
    %1237 = vmatpush1.msra.mxu0 0.0
    %1238 = vmatprep.subr.mxu0 0.0
    %1239 = vmatpush1.msra.mxu0 0.0
    %1240 = vmatprep.subr.mxu0 0.0
    %1241 = vmatpush1.msra.mxu0 0.0
    %1242 = vmatprep.subr.mxu0 0.0
    %1243 = vmatpush1.msra.mxu0 0.0
    %1244 = vmatprep.subr.mxu0 0.0
    %1245 = vmatpush1.msra.mxu0 0.0
    %1246 = vmatprep.subr.mxu0 0.0
    %1247 = vmatpush1.msra.mxu0 0.0
    %1248 = vmatprep.subr.mxu0 0.0
    %1249 = vmatpush1.msra.mxu0 0.0
    %1250 = vmatprep.subr.mxu0 0.0
    %1251 = vmatpush1.msra.mxu0 0.0
    %1252 = vmatprep.subr.mxu0 0.0
    %1253 = vmatpush1.msra.mxu0 0.0
    %1254 = vmatprep.subr.mxu0 0.0
    %1255 = vmatpush1.msra.mxu0 0.0
    %1256 = vmatprep.subr.mxu0 0.0
    %1257 = vmatpush1.msra.mxu0 0.0
    %1258 = vmatprep.subr.mxu0 0.0
    %1259 = vmatpush1.msra.mxu0 0.0
    %1260 = vmatprep.subr.mxu0 0.0
    %1261 = vmatpush1.msra.mxu0 0.0
    %1262 = vmatprep.subr.mxu0 0.0
    %1263 = vmatpush1.msra.mxu0 0.0
    %1264 = vmatprep.subr.mxu0 0.0
    %1265 = vmatpush1.msra.mxu0 0.0
    %1266 = vmatprep.subr.mxu0 0.0
    %1267 = vmatpush1.msra.mxu0 0.0
    %1268 = vmatprep.subr.mxu0 0.0
    %1269 = vmatpush1.msra.mxu0 0.0
    %1270 = vmatprep.mubr.f32.mxu0 0.0
    %1271 = vmatmul.mubr.f32.gmra.mrb[0].mxu0 %v1201
    %v1272 = vpop.f32.mrb[0].mxu0
    %v1273 = vadd.f32 0.0, %v1272
    %v1274 = vpop.f32.mrb[0].mxu0
    %1275 = vdwg.mxu0
    %v1276 = vadd.f32 %v1043, %v1273
    %v1277 = vrot.slane %v876, 2
    %v1278 = vsel %vm751, %v1277, 0
    %1280 = vmatprep.subr.mxu0 0.0
    %1281 = vmatpush1.msra.mxu0 %v1193
    %1282 = vmatprep.subr.mxu0 0.0
    %1283 = vmatpush1.msra.mxu0 %v1194
    %1284 = vmatprep.subr.mxu0 0.0
    %1285 = vmatpush1.msra.mxu0 %v1195
    %1286 = vmatprep.subr.mxu0 0.0
    %1287 = vmatpush1.msra.mxu0 %v1196
    %1288 = vmatprep.subr.mxu0 0.0
    %1289 = vmatpush1.msra.mxu0 %v1197
    %1290 = vmatprep.subr.mxu0 0.0
    %1291 = vmatpush1.msra.mxu0 %v1198
    %1292 = vmatprep.subr.mxu0 0.0
    %1293 = vmatpush1.msra.mxu0 %v1204
    %1294 = vmatprep.subr.mxu0 0.0
    %1295 = vmatpush1.msra.mxu0 0.0
    %1296 = vmatprep.subr.mxu0 0.0
    %1297 = vmatpush1.msra.mxu0 0.0
    %1298 = vmatprep.subr.mxu0 0.0
    %1299 = vmatpush1.msra.mxu0 0.0
    %1300 = vmatprep.subr.mxu0 0.0
    %1301 = vmatpush1.msra.mxu0 0.0
    %1302 = vmatprep.subr.mxu0 0.0
    %1303 = vmatpush1.msra.mxu0 0.0
    %1304 = vmatprep.subr.mxu0 0.0
    %1305 = vmatpush1.msra.mxu0 0.0
    %1306 = vmatprep.subr.mxu0 0.0
    %1307 = vmatpush1.msra.mxu0 0.0
    %1308 = vmatprep.subr.mxu0 0.0
    %1309 = vmatpush1.msra.mxu0 0.0
    %1310 = vmatprep.subr.mxu0 0.0
    %1311 = vmatpush1.msra.mxu0 0.0
    %1312 = vmatprep.subr.mxu0 0.0
    %1313 = vmatpush1.msra.mxu0 0.0
    %1314 = vmatprep.subr.mxu0 0.0
    %1315 = vmatpush1.msra.mxu0 0.0
    %1316 = vmatprep.subr.mxu0 0.0
    %1317 = vmatpush1.msra.mxu0 0.0
    %1318 = vmatprep.subr.mxu0 0.0
    %1319 = vmatpush1.msra.mxu0 0.0
    %1320 = vmatprep.subr.mxu0 0.0
    %1321 = vmatpush1.msra.mxu0 0.0
    %1322 = vmatprep.subr.mxu0 0.0
    %1323 = vmatpush1.msra.mxu0 0.0
    %1324 = vmatprep.subr.mxu0 0.0
    %1325 = vmatpush1.msra.mxu0 0.0
    %1326 = vmatprep.subr.mxu0 0.0
    %1327 = vmatpush1.msra.mxu0 0.0
    %1328 = vmatprep.subr.mxu0 0.0
    %1329 = vmatpush1.msra.mxu0 0.0
    %1330 = vmatprep.subr.mxu0 0.0
    %1331 = vmatpush1.msra.mxu0 0.0
    %1332 = vmatprep.subr.mxu0 0.0
    %1333 = vmatpush1.msra.mxu0 0.0
    %1334 = vmatprep.subr.mxu0 0.0
    %1335 = vmatpush1.msra.mxu0 0.0
    %1336 = vmatprep.subr.mxu0 0.0
    %1337 = vmatpush1.msra.mxu0 0.0
    %1338 = vmatprep.subr.mxu0 0.0
    %1339 = vmatpush1.msra.mxu0 0.0
    %1340 = vmatprep.subr.mxu0 0.0
    %1341 = vmatpush1.msra.mxu0 0.0
    %1342 = vmatprep.subr.mxu0 0.0
    %1343 = vmatpush1.msra.mxu0 0.0
    %1344 = vmatprep.mubr.f32.mxu0 0.0
    %1345 = vmatmul.mubr.f32.gmra.mrb[0].mxu0 %v1278
    %v1346 = vpop.f32.mrb[0].mxu0
    %v1347 = vadd.f32 0.0, %v1346
    %v1348 = vpop.f32.mrb[0].mxu0
    %1349 = vdwg.mxu0
    %v1350 = vadd.f32 %v1189, %v1347
    %s1351 = scalar_lea.vmem %s5, 168
    %v1352 = vld [vmem:[%s1351] sm:$0xff]
    %v1353 = vld [vmem:[%s1351 + $0x8] sm:$0xff]
    %v1354 = vld [vmem:[%s1351 + $0x10] sm:$0xff]
    %v1355 = vld [vmem:[%s1351 + $0x18] sm:$0xff]
    %v1356 = vld [vmem:[%s1351 + $0x20] sm:$0xff]
    %v1357 = vld [vmem:[%s1351 + $0x28] sm:$0xff]
    %v1358 = vld [vmem:[%s1351 + $0x30] sm:$0x1]
    %v1359 = vrot.slane %v875, 3
    %v1360 = vsel %vm751, %v1359, 0
    %v1363 = vsel %vm897, %v1358, 0
    %1365 = vmatprep.subr.mxu0 0.0
    %1366 = vmatpush1.msra.mxu0 %v1352
    %1367 = vmatprep.subr.mxu0 0.0
    %1368 = vmatpush1.msra.mxu0 %v1353
    %1369 = vmatprep.subr.mxu0 0.0
    %1370 = vmatpush1.msra.mxu0 %v1354
    %1371 = vmatprep.subr.mxu0 0.0
    %1372 = vmatpush1.msra.mxu0 %v1355
    %1373 = vmatprep.subr.mxu0 0.0
    %1374 = vmatpush1.msra.mxu0 %v1356
    %1375 = vmatprep.subr.mxu0 0.0
    %1376 = vmatpush1.msra.mxu0 %v1357
    %1377 = vmatprep.subr.mxu0 0.0
    %1378 = vmatpush1.msra.mxu0 %v1363
    %1379 = vmatprep.subr.mxu0 0.0
    %1380 = vmatpush1.msra.mxu0 0.0
    %1381 = vmatprep.subr.mxu0 0.0
    %1382 = vmatpush1.msra.mxu0 0.0
    %1383 = vmatprep.subr.mxu0 0.0
    %1384 = vmatpush1.msra.mxu0 0.0
    %1385 = vmatprep.subr.mxu0 0.0
    %1386 = vmatpush1.msra.mxu0 0.0
    %1387 = vmatprep.subr.mxu0 0.0
    %1388 = vmatpush1.msra.mxu0 0.0
    %1389 = vmatprep.subr.mxu0 0.0
    %1390 = vmatpush1.msra.mxu0 0.0
    %1391 = vmatprep.subr.mxu0 0.0
    %1392 = vmatpush1.msra.mxu0 0.0
    %1393 = vmatprep.subr.mxu0 0.0
    %1394 = vmatpush1.msra.mxu0 0.0
    %1395 = vmatprep.subr.mxu0 0.0
    %1396 = vmatpush1.msra.mxu0 0.0
    %1397 = vmatprep.subr.mxu0 0.0
    %1398 = vmatpush1.msra.mxu0 0.0
    %1399 = vmatprep.subr.mxu0 0.0
    %1400 = vmatpush1.msra.mxu0 0.0
    %1401 = vmatprep.subr.mxu0 0.0
    %1402 = vmatpush1.msra.mxu0 0.0
    %1403 = vmatprep.subr.mxu0 0.0
    %1404 = vmatpush1.msra.mxu0 0.0
    %1405 = vmatprep.subr.mxu0 0.0
    %1406 = vmatpush1.msra.mxu0 0.0
    %1407 = vmatprep.subr.mxu0 0.0
    %1408 = vmatpush1.msra.mxu0 0.0
    %1409 = vmatprep.subr.mxu0 0.0
    %1410 = vmatpush1.msra.mxu0 0.0
    %1411 = vmatprep.subr.mxu0 0.0
    %1412 = vmatpush1.msra.mxu0 0.0
    %1413 = vmatprep.subr.mxu0 0.0
    %1414 = vmatpush1.msra.mxu0 0.0
    %1415 = vmatprep.subr.mxu0 0.0
    %1416 = vmatpush1.msra.mxu0 0.0
    %1417 = vmatprep.subr.mxu0 0.0
    %1418 = vmatpush1.msra.mxu0 0.0
    %1419 = vmatprep.subr.mxu0 0.0
    %1420 = vmatpush1.msra.mxu0 0.0
    %1421 = vmatprep.subr.mxu0 0.0
    %1422 = vmatpush1.msra.mxu0 0.0
    %1423 = vmatprep.subr.mxu0 0.0
    %1424 = vmatpush1.msra.mxu0 0.0
    %1425 = vmatprep.subr.mxu0 0.0
    %1426 = vmatpush1.msra.mxu0 0.0
    %1427 = vmatprep.subr.mxu0 0.0
    %1428 = vmatpush1.msra.mxu0 0.0
    %1429 = vmatprep.mubr.f32.mxu0 0.0
    %1430 = vmatmul.mubr.f32.gmra.mrb[0].mxu0 %v1360
    %v1431 = vpop.f32.mrb[0].mxu0
    %v1432 = vadd.f32 0.0, %v1431
    %v1433 = vpop.f32.mrb[0].mxu0
    %1434 = vdwg.mxu0
    %v1435 = vadd.f32 %v1276, %v1432
    %v1436 = vrot.slane %v876, 3
    %v1437 = vsel %vm751, %v1436, 0
    %1439 = vmatprep.subr.mxu0 0.0
    %1440 = vmatpush1.msra.mxu0 %v1352
    %1441 = vmatprep.subr.mxu0 0.0
    %1442 = vmatpush1.msra.mxu0 %v1353
    %1443 = vmatprep.subr.mxu0 0.0
    %1444 = vmatpush1.msra.mxu0 %v1354
    %1445 = vmatprep.subr.mxu0 0.0
    %1446 = vmatpush1.msra.mxu0 %v1355
    %1447 = vmatprep.subr.mxu0 0.0
    %1448 = vmatpush1.msra.mxu0 %v1356
    %1449 = vmatprep.subr.mxu0 0.0
    %1450 = vmatpush1.msra.mxu0 %v1357
    %1451 = vmatprep.subr.mxu0 0.0
    %1452 = vmatpush1.msra.mxu0 %v1363
    %1453 = vmatprep.subr.mxu0 0.0
    %1454 = vmatpush1.msra.mxu0 0.0
    %1455 = vmatprep.subr.mxu0 0.0
    %1456 = vmatpush1.msra.mxu0 0.0
    %1457 = vmatprep.subr.mxu0 0.0
    %1458 = vmatpush1.msra.mxu0 0.0
    %1459 = vmatprep.subr.mxu0 0.0
    %1460 = vmatpush1.msra.mxu0 0.0
    %1461 = vmatprep.subr.mxu0 0.0
    %1462 = vmatpush1.msra.mxu0 0.0
    %1463 = vmatprep.subr.mxu0 0.0
    %1464 = vmatpush1.msra.mxu0 0.0
    %1465 = vmatprep.subr.mxu0 0.0
    %1466 = vmatpush1.msra.mxu0 0.0
    %1467 = vmatprep.subr.mxu0 0.0
    %1468 = vmatpush1.msra.mxu0 0.0
    %1469 = vmatprep.subr.mxu0 0.0
    %1470 = vmatpush1.msra.mxu0 0.0
    %1471 = vmatprep.subr.mxu0 0.0
    %1472 = vmatpush1.msra.mxu0 0.0
    %1473 = vmatprep.subr.mxu0 0.0
    %1474 = vmatpush1.msra.mxu0 0.0
    %1475 = vmatprep.subr.mxu0 0.0
    %1476 = vmatpush1.msra.mxu0 0.0
    %1477 = vmatprep.subr.mxu0 0.0
    %1478 = vmatpush1.msra.mxu0 0.0
    %1479 = vmatprep.subr.mxu0 0.0
    %1480 = vmatpush1.msra.mxu0 0.0
    %1481 = vmatprep.subr.mxu0 0.0
    %1482 = vmatpush1.msra.mxu0 0.0
    %1483 = vmatprep.subr.mxu0 0.0
    %1484 = vmatpush1.msra.mxu0 0.0
    %1485 = vmatprep.subr.mxu0 0.0
    %1486 = vmatpush1.msra.mxu0 0.0
    %1487 = vmatprep.subr.mxu0 0.0
    %1488 = vmatpush1.msra.mxu0 0.0
    %1489 = vmatprep.subr.mxu0 0.0
    %1490 = vmatpush1.msra.mxu0 0.0
    %1491 = vmatprep.subr.mxu0 0.0
    %1492 = vmatpush1.msra.mxu0 0.0
    %1493 = vmatprep.subr.mxu0 0.0
    %1494 = vmatpush1.msra.mxu0 0.0
    %1495 = vmatprep.subr.mxu0 0.0
    %1496 = vmatpush1.msra.mxu0 0.0
    %1497 = vmatprep.subr.mxu0 0.0
    %1498 = vmatpush1.msra.mxu0 0.0
    %1499 = vmatprep.subr.mxu0 0.0
    %1500 = vmatpush1.msra.mxu0 0.0
    %1501 = vmatprep.subr.mxu0 0.0
    %1502 = vmatpush1.msra.mxu0 0.0
    %1503 = vmatprep.mubr.f32.mxu0 0.0
    %1504 = vmatmul.mubr.f32.gmra.mrb[0].mxu0 %v1437
    %v1505 = vpop.f32.mrb[0].mxu0
    %v1506 = vadd.f32 0.0, %v1505
    %v1507 = vpop.f32.mrb[0].mxu0
    %1508 = vdwg.mxu0
    %v1509 = vadd.f32 %v1350, %v1506
    %s1510 = scalar_lea.vmem %s5, 224
    %v1511 = vld [vmem:[%s1510] sm:$0xff]
    %v1512 = vld [vmem:[%s1510 + $0x8] sm:$0xff]
    %v1513 = vld [vmem:[%s1510 + $0x10] sm:$0xff]
    %v1514 = vld [vmem:[%s1510 + $0x18] sm:$0xff]
    %v1515 = vld [vmem:[%s1510 + $0x20] sm:$0xff]
    %v1516 = vld [vmem:[%s1510 + $0x28] sm:$0xff]
    %v1517 = vld [vmem:[%s1510 + $0x30] sm:$0x1]
    %v1518 = vrot.slane %v875, 4
    %v1519 = vsel %vm751, %v1518, 0
    %v1522 = vsel %vm897, %v1517, 0
    %1524 = vmatprep.subr.mxu0 0.0
    %1525 = vmatpush1.msra.mxu0 %v1511
    %1526 = vmatprep.subr.mxu0 0.0
    %1527 = vmatpush1.msra.mxu0 %v1512
    %1528 = vmatprep.subr.mxu0 0.0
    %1529 = vmatpush1.msra.mxu0 %v1513
    %1530 = vmatprep.subr.mxu0 0.0
    %1531 = vmatpush1.msra.mxu0 %v1514
    %1532 = vmatprep.subr.mxu0 0.0
    %1533 = vmatpush1.msra.mxu0 %v1515
    %1534 = vmatprep.subr.mxu0 0.0
    %1535 = vmatpush1.msra.mxu0 %v1516
    %1536 = vmatprep.subr.mxu0 0.0
    %1537 = vmatpush1.msra.mxu0 %v1522
    %1538 = vmatprep.subr.mxu0 0.0
    %1539 = vmatpush1.msra.mxu0 0.0
    %1540 = vmatprep.subr.mxu0 0.0
    %1541 = vmatpush1.msra.mxu0 0.0
    %1542 = vmatprep.subr.mxu0 0.0
    %1543 = vmatpush1.msra.mxu0 0.0
    %1544 = vmatprep.subr.mxu0 0.0
    %1545 = vmatpush1.msra.mxu0 0.0
    %1546 = vmatprep.subr.mxu0 0.0
    %1547 = vmatpush1.msra.mxu0 0.0
    %1548 = vmatprep.subr.mxu0 0.0
    %1549 = vmatpush1.msra.mxu0 0.0
    %1550 = vmatprep.subr.mxu0 0.0
    %1551 = vmatpush1.msra.mxu0 0.0
    %1552 = vmatprep.subr.mxu0 0.0
    %1553 = vmatpush1.msra.mxu0 0.0
    %1554 = vmatprep.subr.mxu0 0.0
    %1555 = vmatpush1.msra.mxu0 0.0
    %1556 = vmatprep.subr.mxu0 0.0
    %1557 = vmatpush1.msra.mxu0 0.0
    %1558 = vmatprep.subr.mxu0 0.0
    %1559 = vmatpush1.msra.mxu0 0.0
    %1560 = vmatprep.subr.mxu0 0.0
    %1561 = vmatpush1.msra.mxu0 0.0
    %1562 = vmatprep.subr.mxu0 0.0
    %1563 = vmatpush1.msra.mxu0 0.0
    %1564 = vmatprep.subr.mxu0 0.0
    %1565 = vmatpush1.msra.mxu0 0.0
    %1566 = vmatprep.subr.mxu0 0.0
    %1567 = vmatpush1.msra.mxu0 0.0
    %1568 = vmatprep.subr.mxu0 0.0
    %1569 = vmatpush1.msra.mxu0 0.0
    %1570 = vmatprep.subr.mxu0 0.0
    %1571 = vmatpush1.msra.mxu0 0.0
    %1572 = vmatprep.subr.mxu0 0.0
    %1573 = vmatpush1.msra.mxu0 0.0
    %1574 = vmatprep.subr.mxu0 0.0
    %1575 = vmatpush1.msra.mxu0 0.0
    %1576 = vmatprep.subr.mxu0 0.0
    %1577 = vmatpush1.msra.mxu0 0.0
    %1578 = vmatprep.subr.mxu0 0.0
    %1579 = vmatpush1.msra.mxu0 0.0
    %1580 = vmatprep.subr.mxu0 0.0
    %1581 = vmatpush1.msra.mxu0 0.0
    %1582 = vmatprep.subr.mxu0 0.0
    %1583 = vmatpush1.msra.mxu0 0.0
    %1584 = vmatprep.subr.mxu0 0.0
    %1585 = vmatpush1.msra.mxu0 0.0
    %1586 = vmatprep.subr.mxu0 0.0
    %1587 = vmatpush1.msra.mxu0 0.0
    %1588 = vmatprep.mubr.f32.mxu0 0.0
    %1589 = vmatmul.mubr.f32.gmra.mrb[0].mxu0 %v1519
    %v1590 = vpop.f32.mrb[0].mxu0
    %v1591 = vadd.f32 0.0, %v1590
    %v1592 = vpop.f32.mrb[0].mxu0
    %1593 = vdwg.mxu0
    %v1594 = vadd.f32 %v1435, %v1591
    %v1595 = vrot.slane %v876, 4
    %v1596 = vsel %vm751, %v1595, 0
    %1598 = vmatprep.subr.mxu0 0.0
    %1599 = vmatpush1.msra.mxu0 %v1511
    %1600 = vmatprep.subr.mxu0 0.0
    %1601 = vmatpush1.msra.mxu0 %v1512
    %1602 = vmatprep.subr.mxu0 0.0
    %1603 = vmatpush1.msra.mxu0 %v1513
    %1604 = vmatprep.subr.mxu0 0.0
    %1605 = vmatpush1.msra.mxu0 %v1514
    %1606 = vmatprep.subr.mxu0 0.0
    %1607 = vmatpush1.msra.mxu0 %v1515
    %1608 = vmatprep.subr.mxu0 0.0
    %1609 = vmatpush1.msra.mxu0 %v1516
    %1610 = vmatprep.subr.mxu0 0.0
    %1611 = vmatpush1.msra.mxu0 %v1522
    %1612 = vmatprep.subr.mxu0 0.0
    %1613 = vmatpush1.msra.mxu0 0.0
    %1614 = vmatprep.subr.mxu0 0.0
    %1615 = vmatpush1.msra.mxu0 0.0
    %1616 = vmatprep.subr.mxu0 0.0
    %1617 = vmatpush1.msra.mxu0 0.0
    %1618 = vmatprep.subr.mxu0 0.0
    %1619 = vmatpush1.msra.mxu0 0.0
    %1620 = vmatprep.subr.mxu0 0.0
    %1621 = vmatpush1.msra.mxu0 0.0
    %1622 = vmatprep.subr.mxu0 0.0
    %1623 = vmatpush1.msra.mxu0 0.0
    %1624 = vmatprep.subr.mxu0 0.0
    %1625 = vmatpush1.msra.mxu0 0.0
    %1626 = vmatprep.subr.mxu0 0.0
    %1627 = vmatpush1.msra.mxu0 0.0
    %1628 = vmatprep.subr.mxu0 0.0
    %1629 = vmatpush1.msra.mxu0 0.0
    %1630 = vmatprep.subr.mxu0 0.0
    %1631 = vmatpush1.msra.mxu0 0.0
    %1632 = vmatprep.subr.mxu0 0.0
    %1633 = vmatpush1.msra.mxu0 0.0
    %1634 = vmatprep.subr.mxu0 0.0
    %1635 = vmatpush1.msra.mxu0 0.0
    %1636 = vmatprep.subr.mxu0 0.0
    %1637 = vmatpush1.msra.mxu0 0.0
    %1638 = vmatprep.subr.mxu0 0.0
    %1639 = vmatpush1.msra.mxu0 0.0
    %1640 = vmatprep.subr.mxu0 0.0
    %1641 = vmatpush1.msra.mxu0 0.0
    %1642 = vmatprep.subr.mxu0 0.0
    %1643 = vmatpush1.msra.mxu0 0.0
    %1644 = vmatprep.subr.mxu0 0.0
    %1645 = vmatpush1.msra.mxu0 0.0
    %1646 = vmatprep.subr.mxu0 0.0
    %1647 = vmatpush1.msra.mxu0 0.0
    %1648 = vmatprep.subr.mxu0 0.0
    %1649 = vmatpush1.msra.mxu0 0.0
    %1650 = vmatprep.subr.mxu0 0.0
    %1651 = vmatpush1.msra.mxu0 0.0
    %1652 = vmatprep.subr.mxu0 0.0
    %1653 = vmatpush1.msra.mxu0 0.0
    %1654 = vmatprep.subr.mxu0 0.0
    %1655 = vmatpush1.msra.mxu0 0.0
    %1656 = vmatprep.subr.mxu0 0.0
    %1657 = vmatpush1.msra.mxu0 0.0
    %1658 = vmatprep.subr.mxu0 0.0
    %1659 = vmatpush1.msra.mxu0 0.0
    %1660 = vmatprep.subr.mxu0 0.0
    %1661 = vmatpush1.msra.mxu0 0.0
    %1662 = vmatprep.mubr.f32.mxu0 0.0
    %1663 = vmatmul.mubr.f32.gmra.mrb[0].mxu0 %v1596
    %v1664 = vpop.f32.mrb[0].mxu0
    %v1665 = vadd.f32 0.0, %v1664
    %v1666 = vpop.f32.mrb[0].mxu0
    %1667 = vdwg.mxu0
    %v1668 = vadd.f32 %v1509, %v1665
    %s1669 = scalar_lea.vmem %s5, 280
    %v1670 = vld [vmem:[%s1669] sm:$0xff]
    %v1671 = vld [vmem:[%s1669 + $0x8] sm:$0xff]
    %v1672 = vld [vmem:[%s1669 + $0x10] sm:$0xff]
    %v1673 = vld [vmem:[%s1669 + $0x18] sm:$0xff]
    %v1674 = vld [vmem:[%s1669 + $0x20] sm:$0xff]
    %v1675 = vld [vmem:[%s1669 + $0x28] sm:$0xff]
    %v1676 = vld [vmem:[%s1669 + $0x30] sm:$0x1]
    %v1677 = vrot.slane %v875, 5
    %v1678 = vsel %vm751, %v1677, 0
    %v1681 = vsel %vm897, %v1676, 0
    %1683 = vmatprep.subr.mxu0 0.0
    %1684 = vmatpush1.msra.mxu0 %v1670
    %1685 = vmatprep.subr.mxu0 0.0
    %1686 = vmatpush1.msra.mxu0 %v1671
    %1687 = vmatprep.subr.mxu0 0.0
    %1688 = vmatpush1.msra.mxu0 %v1672
    %1689 = vmatprep.subr.mxu0 0.0
    %1690 = vmatpush1.msra.mxu0 %v1673
    %1691 = vmatprep.subr.mxu0 0.0
    %1692 = vmatpush1.msra.mxu0 %v1674
    %1693 = vmatprep.subr.mxu0 0.0
    %1694 = vmatpush1.msra.mxu0 %v1675
    %1695 = vmatprep.subr.mxu0 0.0
    %1696 = vmatpush1.msra.mxu0 %v1681
    %1697 = vmatprep.subr.mxu0 0.0
    %1698 = vmatpush1.msra.mxu0 0.0
    %1699 = vmatprep.subr.mxu0 0.0
    %1700 = vmatpush1.msra.mxu0 0.0
    %1701 = vmatprep.subr.mxu0 0.0
    %1702 = vmatpush1.msra.mxu0 0.0
    %1703 = vmatprep.subr.mxu0 0.0
    %1704 = vmatpush1.msra.mxu0 0.0
    %1705 = vmatprep.subr.mxu0 0.0
    %1706 = vmatpush1.msra.mxu0 0.0
    %1707 = vmatprep.subr.mxu0 0.0
    %1708 = vmatpush1.msra.mxu0 0.0
    %1709 = vmatprep.subr.mxu0 0.0
    %1710 = vmatpush1.msra.mxu0 0.0
    %1711 = vmatprep.subr.mxu0 0.0
    %1712 = vmatpush1.msra.mxu0 0.0
    %1713 = vmatprep.subr.mxu0 0.0
    %1714 = vmatpush1.msra.mxu0 0.0
    %1715 = vmatprep.subr.mxu0 0.0
    %1716 = vmatpush1.msra.mxu0 0.0
    %1717 = vmatprep.subr.mxu0 0.0
    %1718 = vmatpush1.msra.mxu0 0.0
    %1719 = vmatprep.subr.mxu0 0.0
    %1720 = vmatpush1.msra.mxu0 0.0
    %1721 = vmatprep.subr.mxu0 0.0
    %1722 = vmatpush1.msra.mxu0 0.0
    %1723 = vmatprep.subr.mxu0 0.0
    %1724 = vmatpush1.msra.mxu0 0.0
    %1725 = vmatprep.subr.mxu0 0.0
    %1726 = vmatpush1.msra.mxu0 0.0
    %1727 = vmatprep.subr.mxu0 0.0
    %1728 = vmatpush1.msra.mxu0 0.0
    %1729 = vmatprep.subr.mxu0 0.0
    %1730 = vmatpush1.msra.mxu0 0.0
    %1731 = vmatprep.subr.mxu0 0.0
    %1732 = vmatpush1.msra.mxu0 0.0
    %1733 = vmatprep.subr.mxu0 0.0
    %1734 = vmatpush1.msra.mxu0 0.0
    %1735 = vmatprep.subr.mxu0 0.0
    %1736 = vmatpush1.msra.mxu0 0.0
    %1737 = vmatprep.subr.mxu0 0.0
    %1738 = vmatpush1.msra.mxu0 0.0
    %1739 = vmatprep.subr.mxu0 0.0
    %1740 = vmatpush1.msra.mxu0 0.0
    %1741 = vmatprep.subr.mxu0 0.0
    %1742 = vmatpush1.msra.mxu0 0.0
    %1743 = vmatprep.subr.mxu0 0.0
    %1744 = vmatpush1.msra.mxu0 0.0
    %1745 = vmatprep.subr.mxu0 0.0
    %1746 = vmatpush1.msra.mxu0 0.0
    %1747 = vmatprep.mubr.f32.mxu0 0.0
    %1748 = vmatmul.mubr.f32.gmra.mrb[0].mxu0 %v1678
    %v1749 = vpop.f32.mrb[0].mxu0
    %v1750 = vadd.f32 0.0, %v1749
    %v1751 = vpop.f32.mrb[0].mxu0
    %1752 = vdwg.mxu0
    %v1753 = vadd.f32 %v1594, %v1750
    %v1754 = vrot.slane %v876, 5
    %v1755 = vsel %vm751, %v1754, 0
    %1757 = vmatprep.subr.mxu0 0.0
    %1758 = vmatpush1.msra.mxu0 %v1670
    %1759 = vmatprep.subr.mxu0 0.0
    %1760 = vmatpush1.msra.mxu0 %v1671
    %1761 = vmatprep.subr.mxu0 0.0
    %1762 = vmatpush1.msra.mxu0 %v1672
    %1763 = vmatprep.subr.mxu0 0.0
    %1764 = vmatpush1.msra.mxu0 %v1673
    %1765 = vmatprep.subr.mxu0 0.0
    %1766 = vmatpush1.msra.mxu0 %v1674
    %1767 = vmatprep.subr.mxu0 0.0
    %1768 = vmatpush1.msra.mxu0 %v1675
    %1769 = vmatprep.subr.mxu0 0.0
    %1770 = vmatpush1.msra.mxu0 %v1681
    %1771 = vmatprep.subr.mxu0 0.0
    %1772 = vmatpush1.msra.mxu0 0.0
    %1773 = vmatprep.subr.mxu0 0.0
    %1774 = vmatpush1.msra.mxu0 0.0
    %1775 = vmatprep.subr.mxu0 0.0
    %1776 = vmatpush1.msra.mxu0 0.0
    %1777 = vmatprep.subr.mxu0 0.0
    %1778 = vmatpush1.msra.mxu0 0.0
    %1779 = vmatprep.subr.mxu0 0.0
    %1780 = vmatpush1.msra.mxu0 0.0
    %1781 = vmatprep.subr.mxu0 0.0
    %1782 = vmatpush1.msra.mxu0 0.0
    %1783 = vmatprep.subr.mxu0 0.0
    %1784 = vmatpush1.msra.mxu0 0.0
    %1785 = vmatprep.subr.mxu0 0.0
    %1786 = vmatpush1.msra.mxu0 0.0
    %1787 = vmatprep.subr.mxu0 0.0
    %1788 = vmatpush1.msra.mxu0 0.0
    %1789 = vmatprep.subr.mxu0 0.0
    %1790 = vmatpush1.msra.mxu0 0.0
    %1791 = vmatprep.subr.mxu0 0.0
    %1792 = vmatpush1.msra.mxu0 0.0
    %1793 = vmatprep.subr.mxu0 0.0
    %1794 = vmatpush1.msra.mxu0 0.0
    %1795 = vmatprep.subr.mxu0 0.0
    %1796 = vmatpush1.msra.mxu0 0.0
    %1797 = vmatprep.subr.mxu0 0.0
    %1798 = vmatpush1.msra.mxu0 0.0
    %1799 = vmatprep.subr.mxu0 0.0
    %1800 = vmatpush1.msra.mxu0 0.0
    %1801 = vmatprep.subr.mxu0 0.0
    %1802 = vmatpush1.msra.mxu0 0.0
    %1803 = vmatprep.subr.mxu0 0.0
    %1804 = vmatpush1.msra.mxu0 0.0
    %1805 = vmatprep.subr.mxu0 0.0
    %1806 = vmatpush1.msra.mxu0 0.0
    %1807 = vmatprep.subr.mxu0 0.0
    %1808 = vmatpush1.msra.mxu0 0.0
    %1809 = vmatprep.subr.mxu0 0.0
    %1810 = vmatpush1.msra.mxu0 0.0
    %1811 = vmatprep.subr.mxu0 0.0
    %1812 = vmatpush1.msra.mxu0 0.0
    %1813 = vmatprep.subr.mxu0 0.0
    %1814 = vmatpush1.msra.mxu0 0.0
    %1815 = vmatprep.subr.mxu0 0.0
    %1816 = vmatpush1.msra.mxu0 0.0
    %1817 = vmatprep.subr.mxu0 0.0
    %1818 = vmatpush1.msra.mxu0 0.0
    %1819 = vmatprep.subr.mxu0 0.0
    %1820 = vmatpush1.msra.mxu0 0.0
    %1821 = vmatprep.mubr.f32.mxu0 0.0
    %1822 = vmatmul.mubr.f32.gmra.mrb[0].mxu0 %v1755
    %v1823 = vpop.f32.mrb[0].mxu0
    %v1824 = vadd.f32 0.0, %v1823
    %v1825 = vpop.f32.mrb[0].mxu0
    %1826 = vdwg.mxu0
    %v1827 = vadd.f32 %v1668, %v1824
    %s1828 = scalar_lea.vmem %s5, 336
    %v1829 = vld [vmem:[%s1828] sm:$0xff]
    %v1830 = vld [vmem:[%s1828 + $0x8] sm:$0xff]
    %v1831 = vld [vmem:[%s1828 + $0x10] sm:$0xff]
    %v1832 = vld [vmem:[%s1828 + $0x18] sm:$0xff]
    %v1833 = vld [vmem:[%s1828 + $0x20] sm:$0xff]
    %v1834 = vld [vmem:[%s1828 + $0x28] sm:$0xff]
    %v1835 = vld [vmem:[%s1828 + $0x30] sm:$0x1]
    %v1836 = vrot.slane %v875, 6
    %v1837 = vsel %vm751, %v1836, 0
    %v1840 = vsel %vm897, %v1835, 0
    %1842 = vmatprep.subr.mxu0 0.0
    %1843 = vmatpush1.msra.mxu0 %v1829
    %1844 = vmatprep.subr.mxu0 0.0
    %1845 = vmatpush1.msra.mxu0 %v1830
    %1846 = vmatprep.subr.mxu0 0.0
    %1847 = vmatpush1.msra.mxu0 %v1831
    %1848 = vmatprep.subr.mxu0 0.0
    %1849 = vmatpush1.msra.mxu0 %v1832
    %1850 = vmatprep.subr.mxu0 0.0
    %1851 = vmatpush1.msra.mxu0 %v1833
    %1852 = vmatprep.subr.mxu0 0.0
    %1853 = vmatpush1.msra.mxu0 %v1834
    %1854 = vmatprep.subr.mxu0 0.0
    %1855 = vmatpush1.msra.mxu0 %v1840
    %1856 = vmatprep.subr.mxu0 0.0
    %1857 = vmatpush1.msra.mxu0 0.0
    %1858 = vmatprep.subr.mxu0 0.0
    %1859 = vmatpush1.msra.mxu0 0.0
    %1860 = vmatprep.subr.mxu0 0.0
    %1861 = vmatpush1.msra.mxu0 0.0
    %1862 = vmatprep.subr.mxu0 0.0
    %1863 = vmatpush1.msra.mxu0 0.0
    %1864 = vmatprep.subr.mxu0 0.0
    %1865 = vmatpush1.msra.mxu0 0.0
    %1866 = vmatprep.subr.mxu0 0.0
    %1867 = vmatpush1.msra.mxu0 0.0
    %1868 = vmatprep.subr.mxu0 0.0
    %1869 = vmatpush1.msra.mxu0 0.0
    %1870 = vmatprep.subr.mxu0 0.0
    %1871 = vmatpush1.msra.mxu0 0.0
    %1872 = vmatprep.subr.mxu0 0.0
    %1873 = vmatpush1.msra.mxu0 0.0
    %1874 = vmatprep.subr.mxu0 0.0
    %1875 = vmatpush1.msra.mxu0 0.0
    %1876 = vmatprep.subr.mxu0 0.0
    %1877 = vmatpush1.msra.mxu0 0.0
    %1878 = vmatprep.subr.mxu0 0.0
    %1879 = vmatpush1.msra.mxu0 0.0
    %1880 = vmatprep.subr.mxu0 0.0
    %1881 = vmatpush1.msra.mxu0 0.0
    %1882 = vmatprep.subr.mxu0 0.0
    %1883 = vmatpush1.msra.mxu0 0.0
    %1884 = vmatprep.subr.mxu0 0.0
    %1885 = vmatpush1.msra.mxu0 0.0
    %1886 = vmatprep.subr.mxu0 0.0
    %1887 = vmatpush1.msra.mxu0 0.0
    %1888 = vmatprep.subr.mxu0 0.0
    %1889 = vmatpush1.msra.mxu0 0.0
    %1890 = vmatprep.subr.mxu0 0.0
    %1891 = vmatpush1.msra.mxu0 0.0
    %1892 = vmatprep.subr.mxu0 0.0
    %1893 = vmatpush1.msra.mxu0 0.0
    %1894 = vmatprep.subr.mxu0 0.0
    %1895 = vmatpush1.msra.mxu0 0.0
    %1896 = vmatprep.subr.mxu0 0.0
    %1897 = vmatpush1.msra.mxu0 0.0
    %1898 = vmatprep.subr.mxu0 0.0
    %1899 = vmatpush1.msra.mxu0 0.0
    %1900 = vmatprep.subr.mxu0 0.0
    %1901 = vmatpush1.msra.mxu0 0.0
    %1902 = vmatprep.subr.mxu0 0.0
    %1903 = vmatpush1.msra.mxu0 0.0
    %1904 = vmatprep.subr.mxu0 0.0
    %1905 = vmatpush1.msra.mxu0 0.0
    %1906 = vmatprep.mubr.f32.mxu0 0.0
    %1907 = vmatmul.mubr.f32.gmra.mrb[0].mxu0 %v1837
    %v1908 = vpop.f32.mrb[0].mxu0
    %v1909 = vadd.f32 0.0, %v1908
    %v1910 = vpop.f32.mrb[0].mxu0
    %1911 = vdwg.mxu0
    %v1912 = vadd.f32 %v1753, %v1909
    %v1913 = vrot.slane %v876, 6
    %v1914 = vsel %vm751, %v1913, 0
    %1916 = vmatprep.subr.mxu0 0.0
    %1917 = vmatpush1.msra.mxu0 %v1829
    %1918 = vmatprep.subr.mxu0 0.0
    %1919 = vmatpush1.msra.mxu0 %v1830
    %1920 = vmatprep.subr.mxu0 0.0
    %1921 = vmatpush1.msra.mxu0 %v1831
    %1922 = vmatprep.subr.mxu0 0.0
    %1923 = vmatpush1.msra.mxu0 %v1832
    %1924 = vmatprep.subr.mxu0 0.0
    %1925 = vmatpush1.msra.mxu0 %v1833
    %1926 = vmatprep.subr.mxu0 0.0
    %1927 = vmatpush1.msra.mxu0 %v1834
    %1928 = vmatprep.subr.mxu0 0.0
    %1929 = vmatpush1.msra.mxu0 %v1840
    %1930 = vmatprep.subr.mxu0 0.0
    %1931 = vmatpush1.msra.mxu0 0.0
    %1932 = vmatprep.subr.mxu0 0.0
    %1933 = vmatpush1.msra.mxu0 0.0
    %1934 = vmatprep.subr.mxu0 0.0
    %1935 = vmatpush1.msra.mxu0 0.0
    %1936 = vmatprep.subr.mxu0 0.0
    %1937 = vmatpush1.msra.mxu0 0.0
    %1938 = vmatprep.subr.mxu0 0.0
    %1939 = vmatpush1.msra.mxu0 0.0
    %1940 = vmatprep.subr.mxu0 0.0
    %1941 = vmatpush1.msra.mxu0 0.0
    %1942 = vmatprep.subr.mxu0 0.0
    %1943 = vmatpush1.msra.mxu0 0.0
    %1944 = vmatprep.subr.mxu0 0.0
    %1945 = vmatpush1.msra.mxu0 0.0
    %1946 = vmatprep.subr.mxu0 0.0
    %1947 = vmatpush1.msra.mxu0 0.0
    %1948 = vmatprep.subr.mxu0 0.0
    %1949 = vmatpush1.msra.mxu0 0.0
    %1950 = vmatprep.subr.mxu0 0.0
    %1951 = vmatpush1.msra.mxu0 0.0
    %1952 = vmatprep.subr.mxu0 0.0
    %1953 = vmatpush1.msra.mxu0 0.0
    %1954 = vmatprep.subr.mxu0 0.0
    %1955 = vmatpush1.msra.mxu0 0.0
    %1956 = vmatprep.subr.mxu0 0.0
    %1957 = vmatpush1.msra.mxu0 0.0
    %1958 = vmatprep.subr.mxu0 0.0
    %1959 = vmatpush1.msra.mxu0 0.0
    %1960 = vmatprep.subr.mxu0 0.0
    %1961 = vmatpush1.msra.mxu0 0.0
    %1962 = vmatprep.subr.mxu0 0.0
    %1963 = vmatpush1.msra.mxu0 0.0
    %1964 = vmatprep.subr.mxu0 0.0
    %1965 = vmatpush1.msra.mxu0 0.0
    %1966 = vmatprep.subr.mxu0 0.0
    %1967 = vmatpush1.msra.mxu0 0.0
    %1968 = vmatprep.subr.mxu0 0.0
    %1969 = vmatpush1.msra.mxu0 0.0
    %1970 = vmatprep.subr.mxu0 0.0
    %1971 = vmatpush1.msra.mxu0 0.0
    %1972 = vmatprep.subr.mxu0 0.0
    %1973 = vmatpush1.msra.mxu0 0.0
    %1974 = vmatprep.subr.mxu0 0.0
    %1975 = vmatpush1.msra.mxu0 0.0
    %1976 = vmatprep.subr.mxu0 0.0
    %1977 = vmatpush1.msra.mxu0 0.0
    %1978 = vmatprep.subr.mxu0 0.0
    %1979 = vmatpush1.msra.mxu0 0.0
    %1980 = vmatprep.mubr.f32.mxu0 0.0
    %1981 = vmatmul.mubr.f32.gmra.mrb[0].mxu0 %v1914
    %v1982 = vpop.f32.mrb[0].mxu0
    %v1983 = vadd.f32 0.0, %v1982
    %v1984 = vpop.f32.mrb[0].mxu0
    %1985 = vdwg.mxu0
    %v1986 = vadd.f32 %v1827, %v1983
    %s1987 = scalar_lea.vmem %s5, 392
    %v1988 = vld [vmem:[%s1987] sm:$0xff]
    %v1989 = vld [vmem:[%s1987 + $0x8] sm:$0xff]
    %v1990 = vld [vmem:[%s1987 + $0x10] sm:$0xff]
    %v1991 = vld [vmem:[%s1987 + $0x18] sm:$0xff]
    %v1992 = vld [vmem:[%s1987 + $0x20] sm:$0xff]
    %v1993 = vld [vmem:[%s1987 + $0x28] sm:$0xff]
    %v1994 = vld [vmem:[%s1987 + $0x30] sm:$0x1]
    %v1995 = vrot.slane %v875, 7
    %v1996 = vsel %vm751, %v1995, 0
    %v1999 = vsel %vm897, %v1994, 0
    %2001 = vmatprep.subr.mxu0 0.0
    %2002 = vmatpush1.msra.mxu0 %v1988
    %2003 = vmatprep.subr.mxu0 0.0
    %2004 = vmatpush1.msra.mxu0 %v1989
    %2005 = vmatprep.subr.mxu0 0.0
    %2006 = vmatpush1.msra.mxu0 %v1990
    %2007 = vmatprep.subr.mxu0 0.0
    %2008 = vmatpush1.msra.mxu0 %v1991
    %2009 = vmatprep.subr.mxu0 0.0
    %2010 = vmatpush1.msra.mxu0 %v1992
    %2011 = vmatprep.subr.mxu0 0.0
    %2012 = vmatpush1.msra.mxu0 %v1993
    %2013 = vmatprep.subr.mxu0 0.0
    %2014 = vmatpush1.msra.mxu0 %v1999
    %2015 = vmatprep.subr.mxu0 0.0
    %2016 = vmatpush1.msra.mxu0 0.0
    %2017 = vmatprep.subr.mxu0 0.0
    %2018 = vmatpush1.msra.mxu0 0.0
    %2019 = vmatprep.subr.mxu0 0.0
    %2020 = vmatpush1.msra.mxu0 0.0
    %2021 = vmatprep.subr.mxu0 0.0
    %2022 = vmatpush1.msra.mxu0 0.0
    %2023 = vmatprep.subr.mxu0 0.0
    %2024 = vmatpush1.msra.mxu0 0.0
    %2025 = vmatprep.subr.mxu0 0.0
    %2026 = vmatpush1.msra.mxu0 0.0
    %2027 = vmatprep.subr.mxu0 0.0
    %2028 = vmatpush1.msra.mxu0 0.0
    %2029 = vmatprep.subr.mxu0 0.0
    %2030 = vmatpush1.msra.mxu0 0.0
    %2031 = vmatprep.subr.mxu0 0.0
    %2032 = vmatpush1.msra.mxu0 0.0
    %2033 = vmatprep.subr.mxu0 0.0
    %2034 = vmatpush1.msra.mxu0 0.0
    %2035 = vmatprep.subr.mxu0 0.0
    %2036 = vmatpush1.msra.mxu0 0.0
    %2037 = vmatprep.subr.mxu0 0.0
    %2038 = vmatpush1.msra.mxu0 0.0
    %2039 = vmatprep.subr.mxu0 0.0
    %2040 = vmatpush1.msra.mxu0 0.0
    %2041 = vmatprep.subr.mxu0 0.0
    %2042 = vmatpush1.msra.mxu0 0.0
    %2043 = vmatprep.subr.mxu0 0.0
    %2044 = vmatpush1.msra.mxu0 0.0
    %2045 = vmatprep.subr.mxu0 0.0
    %2046 = vmatpush1.msra.mxu0 0.0
    %2047 = vmatprep.subr.mxu0 0.0
    %2048 = vmatpush1.msra.mxu0 0.0
    %2049 = vmatprep.subr.mxu0 0.0
    %2050 = vmatpush1.msra.mxu0 0.0
    %2051 = vmatprep.subr.mxu0 0.0
    %2052 = vmatpush1.msra.mxu0 0.0
    %2053 = vmatprep.subr.mxu0 0.0
    %2054 = vmatpush1.msra.mxu0 0.0
    %2055 = vmatprep.subr.mxu0 0.0
    %2056 = vmatpush1.msra.mxu0 0.0
    %2057 = vmatprep.subr.mxu0 0.0
    %2058 = vmatpush1.msra.mxu0 0.0
    %2059 = vmatprep.subr.mxu0 0.0
    %2060 = vmatpush1.msra.mxu0 0.0
    %2061 = vmatprep.subr.mxu0 0.0
    %2062 = vmatpush1.msra.mxu0 0.0
    %2063 = vmatprep.subr.mxu0 0.0
    %2064 = vmatpush1.msra.mxu0 0.0
    %2065 = vmatprep.mubr.f32.mxu0 0.0
    %2066 = vmatmul.mubr.f32.gmra.mrb[0].mxu0 %v1996
    %v2067 = vpop.f32.mrb[0].mxu0
    %v2068 = vadd.f32 0.0, %v2067
    %v2069 = vpop.f32.mrb[0].mxu0
    %2070 = vdwg.mxu0
    %v2071 = vadd.f32 %v1912, %v2068
    %v2072 = vrot.slane %v876, 7
    %v2073 = vsel %vm751, %v2072, 0
    %2075 = vmatprep.subr.mxu0 0.0
    %2076 = vmatpush1.msra.mxu0 %v1988
    %2077 = vmatprep.subr.mxu0 0.0
    %2078 = vmatpush1.msra.mxu0 %v1989
    %2079 = vmatprep.subr.mxu0 0.0
    %2080 = vmatpush1.msra.mxu0 %v1990
    %2081 = vmatprep.subr.mxu0 0.0
    %2082 = vmatpush1.msra.mxu0 %v1991
    %2083 = vmatprep.subr.mxu0 0.0
    %2084 = vmatpush1.msra.mxu0 %v1992
    %2085 = vmatprep.subr.mxu0 0.0
    %2086 = vmatpush1.msra.mxu0 %v1993
    %2087 = vmatprep.subr.mxu0 0.0
    %2088 = vmatpush1.msra.mxu0 %v1999
    %2089 = vmatprep.subr.mxu0 0.0
    %2090 = vmatpush1.msra.mxu0 0.0
    %2091 = vmatprep.subr.mxu0 0.0
    %2092 = vmatpush1.msra.mxu0 0.0
    %2093 = vmatprep.subr.mxu0 0.0
    %2094 = vmatpush1.msra.mxu0 0.0
    %2095 = vmatprep.subr.mxu0 0.0
    %2096 = vmatpush1.msra.mxu0 0.0
    %2097 = vmatprep.subr.mxu0 0.0
    %2098 = vmatpush1.msra.mxu0 0.0
    %2099 = vmatprep.subr.mxu0 0.0
    %2100 = vmatpush1.msra.mxu0 0.0
    %2101 = vmatprep.subr.mxu0 0.0
    %2102 = vmatpush1.msra.mxu0 0.0
    %2103 = vmatprep.subr.mxu0 0.0
    %2104 = vmatpush1.msra.mxu0 0.0
    %2105 = vmatprep.subr.mxu0 0.0
    %2106 = vmatpush1.msra.mxu0 0.0
    %2107 = vmatprep.subr.mxu0 0.0
    %2108 = vmatpush1.msra.mxu0 0.0
    %2109 = vmatprep.subr.mxu0 0.0
    %2110 = vmatpush1.msra.mxu0 0.0
    %2111 = vmatprep.subr.mxu0 0.0
    %2112 = vmatpush1.msra.mxu0 0.0
    %2113 = vmatprep.subr.mxu0 0.0
    %2114 = vmatpush1.msra.mxu0 0.0
    %2115 = vmatprep.subr.mxu0 0.0
    %2116 = vmatpush1.msra.mxu0 0.0
    %2117 = vmatprep.subr.mxu0 0.0
    %2118 = vmatpush1.msra.mxu0 0.0
    %2119 = vmatprep.subr.mxu0 0.0
    %2120 = vmatpush1.msra.mxu0 0.0
    %2121 = vmatprep.subr.mxu0 0.0
    %2122 = vmatpush1.msra.mxu0 0.0
    %2123 = vmatprep.subr.mxu0 0.0
    %2124 = vmatpush1.msra.mxu0 0.0
    %2125 = vmatprep.subr.mxu0 0.0
    %2126 = vmatpush1.msra.mxu0 0.0
    %2127 = vmatprep.subr.mxu0 0.0
    %2128 = vmatpush1.msra.mxu0 0.0
    %2129 = vmatprep.subr.mxu0 0.0
    %2130 = vmatpush1.msra.mxu0 0.0
    %2131 = vmatprep.subr.mxu0 0.0
    %2132 = vmatpush1.msra.mxu0 0.0
    %2133 = vmatprep.subr.mxu0 0.0
    %2134 = vmatpush1.msra.mxu0 0.0
    %2135 = vmatprep.subr.mxu0 0.0
    %2136 = vmatpush1.msra.mxu0 0.0
    %2137 = vmatprep.subr.mxu0 0.0
    %2138 = vmatpush1.msra.mxu0 0.0
    %2139 = vmatprep.mubr.f32.mxu0 0.0
    %2140 = vmatmul.mubr.f32.gmra.mrb[0].mxu0 %v2073
    %v2141 = vpop.f32.mrb[0].mxu0
    %v2142 = vadd.f32 0.0, %v2141
    %v2143 = vpop.f32.mrb[0].mxu0
    %2144 = vdwg.mxu0
    %v2145 = vadd.f32 %v1986, %v2142
    %v2146 = vadd.f32 %v2071, %v877
    %2147 = vst [vmem:[#allocation2] sm:$0x1] %v2146
    %v2148 = vadd.f32 %v2145, %v877
    %2149 = vst [vmem:[#allocation2 + $0x1] sm:$0x1] %v2148
    // Predicated region
    $region30: #{my_cnn_forward.1} parent=1 // pred_check
      _
    $region31: #{my_cnn_forward.1} parent=1 // pred_check_branch
      %2151 = sbr.rel (0) target = $region33
    $region32: #{my_cnn_forward.1} parent=1 // pred_region
      %s2153 = ssub.s32 32, 32
      %2154 = vsyncadd [#allocation3], %s2153
      %s2156 = sshll.u32 [#allocation2], 4
      %s2157 = int_to_ptr.vmem [resolvable:$true] %s2156
      %2159 = dma.vmem_to_hbm [thread:$0]  %s2157, 32, %s7, [#allocation3]
    $region33: #{my_cnn_forward.1} parent=1 // pred_fallthru
      _
    // Predicated region
    $region34: #{my_cnn_forward.1} parent=1 // pred_check
      _
    $region35: #{my_cnn_forward.1} parent=1 // pred_check_branch
      %2161 = sbr.rel (0) target = $region37
    $region36: #{my_cnn_forward.1} parent=1 // pred_region
      %2162 = dma.done [#allocation3], 32
    $region37: #{my_cnn_forward.1} parent=1 // pred_fallthru
      _
    %2163 = vsyncpa [#allocation3], 1

</llo_original>
